<compile_context>
chip_gen: v6e
topology: v6e:2x2x1
jax: 0.10.0
libtpu: 0.0.40
codegen_flags: <defaults>
</compile_context>

<pallas_src>
import jax
import jax.numpy as jnp
from jax.experimental import pallas as pl
from jax.experimental.pallas import tpu as pltpu


def mlp_diffusion_kernel(x_ref, t_ref, emb_ref,
                         w0_ref, b0_ref, w1_ref, b1_ref,
                         w2_ref, b2_ref, w3_ref, b3_ref,
                         o_ref):
    U = w1_ref.shape[0]
    n_pad = emb_ref.shape[0]          # n_steps padded to a multiple of 8
    TB = x_ref.shape[0]

    # --- In-kernel embedding gather (one-hot MXU matmul, exact in f32). ---
    t = t_ref[...]                                              # (TB, 1) i32
    steps = jax.lax.broadcasted_iota(jnp.int32, (TB, n_pad), 1)
    onehot = (steps == t).astype(jnp.float32)                   # (TB, n_pad)
    e = jnp.dot(onehot, emb_ref[...],
                preferred_element_type=jnp.float32)             # (TB, 3U)
    e0 = e[:, 0:U]
    e1 = e[:, U:2 * U]
    e2 = e[:, 2 * U:3 * U]

    # --- Block 0: Linear(2 -> U) + emb0, ReLU.  K=2 is tiny; keep f32. ---
    h = jnp.dot(x_ref[...], w0_ref[...], preferred_element_type=jnp.float32)
    h = jnp.maximum(h + b0_ref[...] + e0, 0.0)

    # --- Block 1: Linear(U -> U) + emb1, ReLU.  bf16 operands, f32 acc. ---
    h = jnp.dot(h.astype(w1_ref.dtype), w1_ref[...],
                preferred_element_type=jnp.float32)
    h = jnp.maximum(h + b1_ref[...] + e1, 0.0)

    # --- Block 2: Linear(U -> U) + emb2, ReLU.  bf16 operands, f32 acc. ---
    h = jnp.dot(h.astype(w2_ref.dtype), w2_ref[...],
                preferred_element_type=jnp.float32)
    h = jnp.maximum(h + b2_ref[...] + e2, 0.0)

    # --- Final: Linear(U -> 2), f32. ---
    o_ref[...] = (jnp.dot(h, w3_ref[...], preferred_element_type=jnp.float32)
                  + b3_ref[...])


def mlp_diffusion_forward(x, t, params, *, tb=128, use_bf16_matmul=True):
    """x: (B, 2) f32, t: (B,) int step indices. Returns (B, 2) f32."""
    (w0, b0, w1, b1, w2, b2, w3, b3, emb0, emb1, emb2) = params
    B = x.shape[0]
    U = w1.shape[0]
    n_steps = emb0.shape[0]
    assert tb % 8 == 0

    # Pre-cast the two big square weights once (DMA'd half-size, no per-step
    # cast); element-wise path and accumulation stay f32.
    wdt = jnp.bfloat16 if use_bf16_matmul else jnp.float32
    w1_mx = w1.astype(wdt)
    w2_mx = w2.astype(wdt)

    # Concatenate the 3 embedding tables into one VMEM-resident (n, 3U) table;
    # pad n_steps up to a multiple of 8 (padded rows are never selected).
    n_pad = ((n_steps + 7) // 8) * 8
    emb_cat = jnp.concatenate([emb0, emb1, emb2], axis=1)
    if n_pad != n_steps:
        emb_cat = jnp.pad(emb_cat, ((0, n_pad - n_steps), (0, 0)))

    # Pad the batch to a multiple of the tile; pad rows are dropped afterwards.
    B_pad = pl.cdiv(B, tb) * tb
    pad = B_pad - B
    x_p = jnp.pad(x, ((0, pad), (0, 0)))
    t_p = jnp.pad(t.astype(jnp.int32), ((0, pad),)).reshape(B_pad, 1)

    batch_spec = lambda shape: pl.BlockSpec(shape, lambda i: (i, 0))
    const_spec = lambda shape: pl.BlockSpec(shape, lambda i: (0, 0))

    out = pl.pallas_call(
        mlp_diffusion_kernel,
        out_shape=jax.ShapeDtypeStruct((B_pad, 2), jnp.float32),
        grid=(B_pad // tb,),
        in_specs=[
            batch_spec((tb, 2)),            # x
            batch_spec((tb, 1)),            # t
            const_spec((n_pad, 3 * U)),     # embedding tables (resident)
            const_spec((2, U)),             # w0
            const_spec((1, U)),             # b0
            const_spec((U, U)),             # w1 (bf16 or f32)
            const_spec((1, U)),             # b1
            const_spec((U, U)),             # w2 (bf16 or f32)
            const_spec((1, U)),             # b2
            const_spec((U, 2)),             # w3
            const_spec((1, 2)),             # b3
        ],
        out_specs=batch_spec((tb, 2)),
        compiler_params=pltpu.CompilerParams(
            dimension_semantics=("parallel",)),
    )(x_p, t_p, emb_cat, w0, b0, w1_mx, b1, w2_mx, b2, w3, b3)

    return out[:B]


def init_params(key, n_steps, num_units=128):
    ks = jax.random.split(key, 11)
    U = num_units
    # Linear weights stored as (in, out); biases as (1, out) for broadcast.
    w0 = jax.random.normal(ks[0], (2, U), jnp.float32) * 0.5
    b0 = jax.random.normal(ks[1], (1, U), jnp.float32) * 0.1
    w1 = jax.random.normal(ks[2], (U, U), jnp.float32) * (1.0 / jnp.sqrt(U))
    b1 = jax.random.normal(ks[3], (1, U), jnp.float32) * 0.1
    w2 = jax.random.normal(ks[4], (U, U), jnp.float32) * (1.0 / jnp.sqrt(U))
    b2 = jax.random.normal(ks[5], (1, U), jnp.float32) * 0.1
    w3 = jax.random.normal(ks[6], (U, 2), jnp.float32) * (1.0 / jnp.sqrt(U))
    b3 = jax.random.normal(ks[7], (1, 2), jnp.float32) * 0.1
    emb0 = jax.random.normal(ks[8], (n_steps, U), jnp.float32)
    emb1 = jax.random.normal(ks[9], (n_steps, U), jnp.float32)
    emb2 = jax.random.normal(ks[10], (n_steps, U), jnp.float32)
    return (w0, b0, w1, b1, w2, b2, w3, b3, emb0, emb1, emb2)


def reference_forward(x, t, params):
    """Pure-JAX f32 reference (full-precision matmuls) matching PyTorch."""
    (w0, b0, w1, b1, w2, b2, w3, b3, emb0, emb1, emb2) = params
    hp = jax.lax.Precision.HIGHEST
    h = x @ w0 + b0 + emb0[t]
    h = jnp.maximum(h, 0.0)
    h = jnp.dot(h, w1, precision=hp) + b1 + emb1[t]
    h = jnp.maximum(h, 0.0)
    h = jnp.dot(h, w2, precision=hp) + b2 + emb2[t]
    h = jnp.maximum(h, 0.0)
    return jnp.dot(h, w3, precision=hp) + b3


if __name__ == "__main__":
    # Small, deterministic shapes: the module implies x: (B, 2), t: (B,),
    # hidden width num_units, and n_steps embedding rows.
    n_steps = 50
    num_units = 128
    B = 200          # not a multiple of the tile -> exercises padding + a
                     # 2-step grid with VMEM-resident weights.

    key = jax.random.PRNGKey(0)
    k_param, k_x, k_t = jax.random.split(key, 3)
    params = init_params(k_param, n_steps, num_units)

    x = jax.random.normal(k_x, (B, 2), jnp.float32)
    t = jax.random.randint(k_t, (B,), 0, n_steps, jnp.int32)

    out = jax.block_until_ready(mlp_diffusion_forward(x, t, params, tb=128))
    ref = reference_forward(x, t, params)
    assert out.shape == (B, 2)
    # bf16 matmul operands give ~1e-2 absolute error at these magnitudes;
    # tolerance carries ~10x margin while still catching structural bugs.
    assert jnp.allclose(out, ref, atol=1e-1, rtol=1e-1), "kernel mismatch"

    print("KERNEL_OK")
</pallas_src>

<mosaic_0001>
module attributes {stable_mosaic.version = 11 : i64} {
  func.func @mlp_diffusion_kernel(%arg0: i32, %arg1: memref<128x2xf32, #tpu.memory_space<vmem>>, %arg2: memref<128x1xi32, #tpu.memory_space<vmem>>, %arg3: memref<56x384xf32, #tpu.memory_space<vmem>>, %arg4: memref<2x128xf32, #tpu.memory_space<vmem>>, %arg5: memref<1x128xf32, #tpu.memory_space<vmem>>, %arg6: memref<128x128xbf16, #tpu.memory_space<vmem>>, %arg7: memref<1x128xf32, #tpu.memory_space<vmem>>, %arg8: memref<128x128xbf16, #tpu.memory_space<vmem>>, %arg9: memref<1x128xf32, #tpu.memory_space<vmem>>, %arg10: memref<128x2xf32, #tpu.memory_space<vmem>>, %arg11: memref<1x2xf32, #tpu.memory_space<vmem>>, %arg12: memref<128x2xf32, #tpu.memory_space<vmem>>) attributes {dimension_semantics = [#tpu.dimension_semantics<parallel>], iteration_bounds = array<i64: 2>, scalar_prefetch = 0 : i64, scratch_operands = 0 : i64, tpu.core_type = #tpu.core_type<tc>, window_params = [{transform_indices = @transform_0, window_bounds = array<i64: 128, 2>}, {transform_indices = @transform_1, window_bounds = array<i64: 128, 1>}, {pipeline_mode = #tpu.pipeline_mode<synchronous>, transform_indices = @transform_2, window_bounds = array<i64: 56, 384>}, {pipeline_mode = #tpu.pipeline_mode<synchronous>, transform_indices = @transform_3, window_bounds = array<i64: 2, 128>}, {pipeline_mode = #tpu.pipeline_mode<synchronous>, transform_indices = @transform_4, window_bounds = array<i64: 1, 128>}, {pipeline_mode = #tpu.pipeline_mode<synchronous>, transform_indices = @transform_5, window_bounds = array<i64: 128, 128>}, {pipeline_mode = #tpu.pipeline_mode<synchronous>, transform_indices = @transform_6, window_bounds = array<i64: 1, 128>}, {pipeline_mode = #tpu.pipeline_mode<synchronous>, transform_indices = @transform_7, window_bounds = array<i64: 128, 128>}, {pipeline_mode = #tpu.pipeline_mode<synchronous>, transform_indices = @transform_8, window_bounds = array<i64: 1, 128>}, {pipeline_mode = #tpu.pipeline_mode<synchronous>, transform_indices = @transform_9, window_bounds = array<i64: 128, 2>}, {pipeline_mode = #tpu.pipeline_mode<synchronous>, transform_indices = @transform_10, window_bounds = array<i64: 1, 2>}, {transform_indices = @transform_11, window_bounds = array<i64: 128, 2>}]} {
    %c0 = arith.constant 0 : index
    %c0_0 = arith.constant 0 : index
    %0 = vector.load %arg2[%c0, %c0_0] : memref<128x1xi32, #tpu.memory_space<vmem>>, vector<128x1xi32>
    %1 = tpu.iota {dimensions = array<i32: 1>} : vector<128x56xi32>
    %2 = vector.broadcast %0 : vector<128x1xi32> to vector<128x56xi32>
    %3 = arith.cmpi eq, %1, %2 : vector<128x56xi32>
    %4 = arith.extui %3 : vector<128x56xi1> to vector<128x56xi32>
    %5 = arith.sitofp %4 : vector<128x56xi32> to vector<128x56xf32>
    %c0_1 = arith.constant 0 : index
    %c0_2 = arith.constant 0 : index
    %6 = vector.load %arg3[%c0_1, %c0_2] : memref<56x384xf32, #tpu.memory_space<vmem>>, vector<56x384xf32>
    %cst = arith.constant dense<0.000000e+00> : vector<128x384xf32>
    %7 = tpu.matmul %5, %6, %cst {dimension_numbers = #tpu.dot_dimension_numbers<[1], [0], [0], [1], [0, 0, 1, 1], [], []>} : vector<128x56xf32>, vector<56x384xf32>, vector<128x384xf32> -> vector<128x384xf32>
    %8 = vector.extract_strided_slice %7 {offsets = [0, 0], sizes = [128, 128], strides = [1, 1]} : vector<128x384xf32> to vector<128x128xf32>
    %9 = vector.extract_strided_slice %7 {offsets = [0, 128], sizes = [128, 128], strides = [1, 1]} : vector<128x384xf32> to vector<128x128xf32>
    %10 = vector.extract_strided_slice %7 {offsets = [0, 256], sizes = [128, 128], strides = [1, 1]} : vector<128x384xf32> to vector<128x128xf32>
    %c0_3 = arith.constant 0 : index
    %c0_4 = arith.constant 0 : index
    %11 = vector.load %arg1[%c0_3, %c0_4] : memref<128x2xf32, #tpu.memory_space<vmem>>, vector<128x2xf32>
    %c0_5 = arith.constant 0 : index
    %c0_6 = arith.constant 0 : index
    %12 = vector.load %arg4[%c0_5, %c0_6] : memref<2x128xf32, #tpu.memory_space<vmem>>, vector<2x128xf32>
    %cst_7 = arith.constant dense<0.000000e+00> : vector<128x128xf32>
    %13 = tpu.matmul %11, %12, %cst_7 {dimension_numbers = #tpu.dot_dimension_numbers<[1], [0], [0], [1], [0, 0, 1, 1], [], []>} : vector<128x2xf32>, vector<2x128xf32>, vector<128x128xf32> -> vector<128x128xf32>
    %c0_8 = arith.constant 0 : index
    %c0_9 = arith.constant 0 : index
    %14 = vector.load %arg5[%c0_8, %c0_9] : memref<1x128xf32, #tpu.memory_space<vmem>>, vector<1x128xf32>
    %15 = vector.broadcast %14 : vector<1x128xf32> to vector<128x128xf32>
    %16 = arith.addf %13, %15 : vector<128x128xf32>
    %17 = arith.addf %16, %8 : vector<128x128xf32>
    %cst_10 = arith.constant 0.000000e+00 : f32
    %18 = vector.broadcast %cst_10 : f32 to vector<128x128xf32>
    %19 = arith.maximumf %17, %18 : vector<128x128xf32>
    %20 = arith.truncf %19 : vector<128x128xf32> to vector<128x128xbf16>
    %c0_11 = arith.constant 0 : index
    %c0_12 = arith.constant 0 : index
    %21 = vector.load %arg6[%c0_11, %c0_12] : memref<128x128xbf16, #tpu.memory_space<vmem>>, vector<128x128xbf16>
    %cst_13 = arith.constant dense<0.000000e+00> : vector<128x128xf32>
    %22 = tpu.matmul %20, %21, %cst_13 {dimension_numbers = #tpu.dot_dimension_numbers<[1], [0], [0], [1], [0, 0, 1, 1], [], []>} : vector<128x128xbf16>, vector<128x128xbf16>, vector<128x128xf32> -> vector<128x128xf32>
    %c0_14 = arith.constant 0 : index
    %c0_15 = arith.constant 0 : index
    %23 = vector.load %arg7[%c0_14, %c0_15] : memref<1x128xf32, #tpu.memory_space<vmem>>, vector<1x128xf32>
    %24 = vector.broadcast %23 : vector<1x128xf32> to vector<128x128xf32>
    %25 = arith.addf %22, %24 : vector<128x128xf32>
    %26 = arith.addf %25, %9 : vector<128x128xf32>
    %cst_16 = arith.constant 0.000000e+00 : f32
    %27 = vector.broadcast %cst_16 : f32 to vector<128x128xf32>
    %28 = arith.maximumf %26, %27 : vector<128x128xf32>
    %29 = arith.truncf %28 : vector<128x128xf32> to vector<128x128xbf16>
    %c0_17 = arith.constant 0 : index
    %c0_18 = arith.constant 0 : index
    %30 = vector.load %arg8[%c0_17, %c0_18] : memref<128x128xbf16, #tpu.memory_space<vmem>>, vector<128x128xbf16>
    %cst_19 = arith.constant dense<0.000000e+00> : vector<128x128xf32>
    %31 = tpu.matmul %29, %30, %cst_19 {dimension_numbers = #tpu.dot_dimension_numbers<[1], [0], [0], [1], [0, 0, 1, 1], [], []>} : vector<128x128xbf16>, vector<128x128xbf16>, vector<128x128xf32> -> vector<128x128xf32>
    %c0_20 = arith.constant 0 : index
    %c0_21 = arith.constant 0 : index
    %32 = vector.load %arg9[%c0_20, %c0_21] : memref<1x128xf32, #tpu.memory_space<vmem>>, vector<1x128xf32>
    %33 = vector.broadcast %32 : vector<1x128xf32> to vector<128x128xf32>
    %34 = arith.addf %31, %33 : vector<128x128xf32>
    %35 = arith.addf %34, %10 : vector<128x128xf32>
    %cst_22 = arith.constant 0.000000e+00 : f32
    %36 = vector.broadcast %cst_22 : f32 to vector<128x128xf32>
    %37 = arith.maximumf %35, %36 : vector<128x128xf32>
    %c0_23 = arith.constant 0 : index
    %c0_24 = arith.constant 0 : index
    %38 = vector.load %arg10[%c0_23, %c0_24] : memref<128x2xf32, #tpu.memory_space<vmem>>, vector<128x2xf32>
    %cst_25 = arith.constant dense<0.000000e+00> : vector<128x2xf32>
    %39 = tpu.matmul %37, %38, %cst_25 {dimension_numbers = #tpu.dot_dimension_numbers<[1], [0], [0], [1], [0, 0, 1, 1], [], []>} : vector<128x128xf32>, vector<128x2xf32>, vector<128x2xf32> -> vector<128x2xf32>
    %c0_26 = arith.constant 0 : index
    %c0_27 = arith.constant 0 : index
    %40 = vector.load %arg11[%c0_26, %c0_27] : memref<1x2xf32, #tpu.memory_space<vmem>>, vector<1x2xf32>
    %41 = vector.broadcast %40 : vector<1x2xf32> to vector<128x2xf32>
    %42 = arith.addf %39, %41 : vector<128x2xf32>
    %c0_28 = arith.constant 0 : index
    %c0_29 = arith.constant 0 : index
    %43 = vector.load %arg12[%c0_28, %c0_29] : memref<128x2xf32, #tpu.memory_space<vmem>>, vector<128x2xf32>
    tpu.vector_store %arg12[%c0_28, %c0_29], %42 {strides = array<i32>} : memref<128x2xf32, #tpu.memory_space<vmem>>, vector<128x2xf32>,
    return
  }
  func.func @transform_0(%arg0: i32) -> (i32, i32) {
    %c0_i32 = arith.constant 0 : i32
    %c0_i32_0 = arith.constant 0 : i32
    return %arg0, %c0_i32 : i32, i32
  }
  func.func @transform_1(%arg0: i32) -> (i32, i32) {
    %c0_i32 = arith.constant 0 : i32
    %c0_i32_0 = arith.constant 0 : i32
    return %arg0, %c0_i32 : i32, i32
  }
  func.func @transform_2(%arg0: i32) -> (i32, i32) {
    %c0_i32 = arith.constant 0 : i32
    %c0_i32_0 = arith.constant 0 : i32
    %c0_i32_1 = arith.constant 0 : i32
    return %c0_i32, %c0_i32_0 : i32, i32
  }
  func.func @transform_3(%arg0: i32) -> (i32, i32) {
    %c0_i32 = arith.constant 0 : i32
    %c0_i32_0 = arith.constant 0 : i32
    %c0_i32_1 = arith.constant 0 : i32
    return %c0_i32, %c0_i32_0 : i32, i32
  }
  func.func @transform_4(%arg0: i32) -> (i32, i32) {
    %c0_i32 = arith.constant 0 : i32
    %c0_i32_0 = arith.constant 0 : i32
    %c0_i32_1 = arith.constant 0 : i32
    return %c0_i32, %c0_i32_0 : i32, i32
  }
  func.func @transform_5(%arg0: i32) -> (i32, i32) {
    %c0_i32 = arith.constant 0 : i32
    %c0_i32_0 = arith.constant 0 : i32
    %c0_i32_1 = arith.constant 0 : i32
    return %c0_i32, %c0_i32_0 : i32, i32
  }
  func.func @transform_6(%arg0: i32) -> (i32, i32) {
    %c0_i32 = arith.constant 0 : i32
    %c0_i32_0 = arith.constant 0 : i32
    %c0_i32_1 = arith.constant 0 : i32
    return %c0_i32, %c0_i32_0 : i32, i32
  }
  func.func @transform_7(%arg0: i32) -> (i32, i32) {
    %c0_i32 = arith.constant 0 : i32
    %c0_i32_0 = arith.constant 0 : i32
    %c0_i32_1 = arith.constant 0 : i32
    return %c0_i32, %c0_i32_0 : i32, i32
  }
  func.func @transform_8(%arg0: i32) -> (i32, i32) {
    %c0_i32 = arith.constant 0 : i32
    %c0_i32_0 = arith.constant 0 : i32
    %c0_i32_1 = arith.constant 0 : i32
    return %c0_i32, %c0_i32_0 : i32, i32
  }
  func.func @transform_9(%arg0: i32) -> (i32, i32) {
    %c0_i32 = arith.constant 0 : i32
    %c0_i32_0 = arith.constant 0 : i32
    %c0_i32_1 = arith.constant 0 : i32
    return %c0_i32, %c0_i32_0 : i32, i32
  }
  func.func @transform_10(%arg0: i32) -> (i32, i32) {
    %c0_i32 = arith.constant 0 : i32
    %c0_i32_0 = arith.constant 0 : i32
    %c0_i32_1 = arith.constant 0 : i32
    return %c0_i32, %c0_i32_0 : i32, i32
  }
  func.func @transform_11(%arg0: i32) -> (i32, i32) {
    %c0_i32 = arith.constant 0 : i32
    %c0_i32_0 = arith.constant 0 : i32
    return %arg0, %c0_i32 : i32, i32
  }
}

</mosaic_0001>

<llo_original>
// kernel: tpu_custom_call.1
$region0: #{tpu_custom_call.1}
  #allocation0 [shape = 'u32[]', space=smem, size = 0x4, offset = 0x4, fixed_abs, tag = 'smem constant byte address 0x4 - core index']
  #allocation1 [shape = 'u32[144,128]{1,0:T(1,128)}', space=vmem, size = 0x12000, scoped, tag = 'internal scratch']
  %s0 = inlined_call_operand.vmem [shape: f32[256,2], index: 0, kind: input, shape index: {}]
  %s1 = inlined_call_operand.vmem [shape: s32[256,1], index: 1, kind: input, shape index: {}]
  %s2 = inlined_call_operand.vmem [shape: f32[56,384], index: 2, kind: input, shape index: {}]
  %s3 = inlined_call_operand.vmem [shape: f32[2,128], index: 3, kind: input, shape index: {}]
  %s4 = inlined_call_operand.vmem [shape: f32[1,128], index: 4, kind: input, shape index: {}]
  %s5 = inlined_call_operand.vmem [shape: bf16[128,128], index: 5, kind: input, shape index: {}]
  %s6 = inlined_call_operand.vmem [shape: f32[1,128], index: 6, kind: input, shape index: {}]
  %s7 = inlined_call_operand.vmem [shape: bf16[128,128], index: 7, kind: input, shape index: {}]
  %s8 = inlined_call_operand.vmem [shape: f32[1,128], index: 8, kind: input, shape index: {}]
  %s9 = inlined_call_operand.vmem [shape: f32[128,2], index: 9, kind: input, shape index: {}]
  %s10 = inlined_call_operand.vmem [shape: f32[1,2], index: 10, kind: input, shape index: {}]
  %s11 = inlined_call_operand.vmem [shape: f32[256,2], index: 11, kind: output, shape index: {}]
  %s12 = sld [smem:[#allocation0]]
  $region77: #{tpu_custom_call.1} parent=0
    _
  %s14 = ssub.s32 1, %s12
  %s15 = scalar_select 0, %s14, %s12
  loop: start=0, step=1, limit=4
  $region2: #{tpu_custom_call.1} parent=0 // loop_pre_header
    _
  $region3: #{tpu_custom_call.1} parent=0 // loop_header
    %s17 = sphi 0, %s21
    %p18 = scmp.ge.s32.totalorder %s17, 4
    %s27 = sphi 0, %s29
    %s30 = sphi 0, %s27
    %s31 = sphi 0, %s30
    %s47 = sphi 0, %s31
    %s53 = sphi 0, %s55
    %s56 = sphi 0, %s53
    %s57 = sphi 0, %s56
    %s73 = sphi 0, %s57
    %s77 = sphi 0, %s77
    %s79 = sphi 0, %s77
    %s80 = sphi 0, %s79
    %s94 = sphi 0, %s80
    %s98 = sphi 0, %s98
    %s100 = sphi 0, %s98
    %s101 = sphi 0, %s100
    %s115 = sphi 0, %s101
    %s119 = sphi 0, %s119
    %s121 = sphi 0, %s119
    %s122 = sphi 0, %s121
    %s136 = sphi 0, %s122
    %s140 = sphi 0, %s140
    %s142 = sphi 0, %s140
    %s143 = sphi 0, %s142
    %s157 = sphi 0, %s143
    %s161 = sphi 0, %s161
    %s163 = sphi 0, %s161
    %s164 = sphi 0, %s163
    %s178 = sphi 0, %s164
    %s182 = sphi 0, %s182
    %s184 = sphi 0, %s182
    %s185 = sphi 0, %s184
    %s199 = sphi 0, %s185
    %s203 = sphi 0, %s203
    %s205 = sphi 0, %s203
    %s206 = sphi 0, %s205
    %s220 = sphi 0, %s206
    %s224 = sphi 0, %s224
    %s226 = sphi 0, %s224
    %s227 = sphi 0, %s226
    %s241 = sphi 0, %s227
    %s245 = sphi 0, %s245
    %s247 = sphi 0, %s245
    %s248 = sphi 0, %s247
    %s262 = sphi 0, %s248
    %s268 = sphi 0, %s270
    %s271 = sphi 0, %s268
    %s272 = sphi 0, %s271
    %s288 = sphi 0, %s272
  $region4: #{tpu_custom_call.1} parent=0 // loop_header_branch
    %20 = sbr.rel (%p18) target = $region8
  $region5: #{tpu_custom_call.1} parent=0 // loop_body
    %s22 = ssub.s32 %s17, 1
    %s23 = ssub.s32 %s17, 2
    %s24 = sadd.s32 %s17, 1
    %s25 = ssub.s32 %s17, %s24
    %p26 = scmp.eq.s32.totalorder %s25, 0
    %s28 = sadd.s32 %s27, 1
    %s29 = scalar_select %p26, %s27, %s28
    %p32 = pneg %p26
    %p33 = scmp.eq.s32.totalorder %s17, 1
    %p34 = por %p32, %p33
    %p35 = scmp.ne.s32.totalorder %s27, %s30
    %p36 = scmp.eq.s32.totalorder %s17, 0
    %p37 = por %p35, %p36
    %p38 = scmp.ne.s32.totalorder %s27, %s30
    %p39 = scmp.eq.s32.totalorder %s22, 1
    %p40 = por %p38, %p39
    %p41 = scmp.ne.s32.totalorder %s30, %s31
    %p42 = scmp.eq.s32.totalorder %s22, 0
    %p43 = por %p41, %p42
    %p44 = scmp.ne.s32.totalorder %s30, %s31
    %p45 = scmp.eq.s32.totalorder %s23, 1
    %p46 = por %p44, %p45
    %p48 = scmp.ne.s32.totalorder %s31, %s47
    %p49 = scmp.eq.s32.totalorder %s23, 0
    %p50 = por %p48, %p49
    %s51 = ssub.s32 %s17, %s24
    %p52 = scmp.eq.s32.totalorder %s51, 0
    %s54 = sadd.s32 %s53, 1
    %s55 = scalar_select %p52, %s53, %s54
    %p58 = pneg %p52
    %p59 = scmp.eq.s32.totalorder %s17, 1
    %p60 = por %p58, %p59
    %p61 = scmp.ne.s32.totalorder %s53, %s56
    %p62 = scmp.eq.s32.totalorder %s17, 0
    %p63 = por %p61, %p62
    %p64 = scmp.ne.s32.totalorder %s53, %s56
    %p65 = scmp.eq.s32.totalorder %s22, 1
    %p66 = por %p64, %p65
    %p67 = scmp.ne.s32.totalorder %s56, %s57
    %p68 = scmp.eq.s32.totalorder %s22, 0
    %p69 = por %p67, %p68
    %p70 = scmp.ne.s32.totalorder %s56, %s57
    %p71 = scmp.eq.s32.totalorder %s23, 1
    %p72 = por %p70, %p71
    %p74 = scmp.ne.s32.totalorder %s57, %s73
    %p75 = scmp.eq.s32.totalorder %s23, 0
    %p76 = por %p74, %p75
    %s78 = sadd.s32 %s77, 1
    %p81 = scmp.eq.s32.totalorder %s17, 1
    %p82 = scmp.ne.s32.totalorder %s77, %s79
    %p83 = scmp.eq.s32.totalorder %s17, 0
    %p84 = por %p82, %p83
    %p85 = scmp.ne.s32.totalorder %s77, %s79
    %p86 = scmp.eq.s32.totalorder %s22, 1
    %p87 = por %p85, %p86
    %p88 = scmp.ne.s32.totalorder %s79, %s80
    %p89 = scmp.eq.s32.totalorder %s22, 0
    %p90 = por %p88, %p89
    %p91 = scmp.ne.s32.totalorder %s79, %s80
    %p92 = scmp.eq.s32.totalorder %s23, 1
    %p93 = por %p91, %p92
    %p95 = scmp.ne.s32.totalorder %s80, %s94
    %p96 = scmp.eq.s32.totalorder %s23, 0
    %p97 = por %p95, %p96
    %s99 = sadd.s32 %s98, 1
    %p102 = scmp.eq.s32.totalorder %s17, 1
    %p103 = scmp.ne.s32.totalorder %s98, %s100
    %p104 = scmp.eq.s32.totalorder %s17, 0
    %p105 = por %p103, %p104
    %p106 = scmp.ne.s32.totalorder %s98, %s100
    %p107 = scmp.eq.s32.totalorder %s22, 1
    %p108 = por %p106, %p107
    %p109 = scmp.ne.s32.totalorder %s100, %s101
    %p110 = scmp.eq.s32.totalorder %s22, 0
    %p111 = por %p109, %p110
    %p112 = scmp.ne.s32.totalorder %s100, %s101
    %p113 = scmp.eq.s32.totalorder %s23, 1
    %p114 = por %p112, %p113
    %p116 = scmp.ne.s32.totalorder %s101, %s115
    %p117 = scmp.eq.s32.totalorder %s23, 0
    %p118 = por %p116, %p117
    %s120 = sadd.s32 %s119, 1
    %p123 = scmp.eq.s32.totalorder %s17, 1
    %p124 = scmp.ne.s32.totalorder %s119, %s121
    %p125 = scmp.eq.s32.totalorder %s17, 0
    %p126 = por %p124, %p125
    %p127 = scmp.ne.s32.totalorder %s119, %s121
    %p128 = scmp.eq.s32.totalorder %s22, 1
    %p129 = por %p127, %p128
    %p130 = scmp.ne.s32.totalorder %s121, %s122
    %p131 = scmp.eq.s32.totalorder %s22, 0
    %p132 = por %p130, %p131
    %p133 = scmp.ne.s32.totalorder %s121, %s122
    %p134 = scmp.eq.s32.totalorder %s23, 1
    %p135 = por %p133, %p134
    %p137 = scmp.ne.s32.totalorder %s122, %s136
    %p138 = scmp.eq.s32.totalorder %s23, 0
    %p139 = por %p137, %p138
    %s141 = sadd.s32 %s140, 1
    %p144 = scmp.eq.s32.totalorder %s17, 1
    %p145 = scmp.ne.s32.totalorder %s140, %s142
    %p146 = scmp.eq.s32.totalorder %s17, 0
    %p147 = por %p145, %p146
    %p148 = scmp.ne.s32.totalorder %s140, %s142
    %p149 = scmp.eq.s32.totalorder %s22, 1
    %p150 = por %p148, %p149
    %p151 = scmp.ne.s32.totalorder %s142, %s143
    %p152 = scmp.eq.s32.totalorder %s22, 0
    %p153 = por %p151, %p152
    %p154 = scmp.ne.s32.totalorder %s142, %s143
    %p155 = scmp.eq.s32.totalorder %s23, 1
    %p156 = por %p154, %p155
    %p158 = scmp.ne.s32.totalorder %s143, %s157
    %p159 = scmp.eq.s32.totalorder %s23, 0
    %p160 = por %p158, %p159
    %s162 = sadd.s32 %s161, 1
    %p165 = scmp.eq.s32.totalorder %s17, 1
    %p166 = scmp.ne.s32.totalorder %s161, %s163
    %p167 = scmp.eq.s32.totalorder %s17, 0
    %p168 = por %p166, %p167
    %p169 = scmp.ne.s32.totalorder %s161, %s163
    %p170 = scmp.eq.s32.totalorder %s22, 1
    %p171 = por %p169, %p170
    %p172 = scmp.ne.s32.totalorder %s163, %s164
    %p173 = scmp.eq.s32.totalorder %s22, 0
    %p174 = por %p172, %p173
    %p175 = scmp.ne.s32.totalorder %s163, %s164
    %p176 = scmp.eq.s32.totalorder %s23, 1
    %p177 = por %p175, %p176
    %p179 = scmp.ne.s32.totalorder %s164, %s178
    %p180 = scmp.eq.s32.totalorder %s23, 0
    %p181 = por %p179, %p180
    %s183 = sadd.s32 %s182, 1
    %p186 = scmp.eq.s32.totalorder %s17, 1
    %p187 = scmp.ne.s32.totalorder %s182, %s184
    %p188 = scmp.eq.s32.totalorder %s17, 0
    %p189 = por %p187, %p188
    %p190 = scmp.ne.s32.totalorder %s182, %s184
    %p191 = scmp.eq.s32.totalorder %s22, 1
    %p192 = por %p190, %p191
    %p193 = scmp.ne.s32.totalorder %s184, %s185
    %p194 = scmp.eq.s32.totalorder %s22, 0
    %p195 = por %p193, %p194
    %p196 = scmp.ne.s32.totalorder %s184, %s185
    %p197 = scmp.eq.s32.totalorder %s23, 1
    %p198 = por %p196, %p197
    %p200 = scmp.ne.s32.totalorder %s185, %s199
    %p201 = scmp.eq.s32.totalorder %s23, 0
    %p202 = por %p200, %p201
    %s204 = sadd.s32 %s203, 1
    %p207 = scmp.eq.s32.totalorder %s17, 1
    %p208 = scmp.ne.s32.totalorder %s203, %s205
    %p209 = scmp.eq.s32.totalorder %s17, 0
    %p210 = por %p208, %p209
    %p211 = scmp.ne.s32.totalorder %s203, %s205
    %p212 = scmp.eq.s32.totalorder %s22, 1
    %p213 = por %p211, %p212
    %p214 = scmp.ne.s32.totalorder %s205, %s206
    %p215 = scmp.eq.s32.totalorder %s22, 0
    %p216 = por %p214, %p215
    %p217 = scmp.ne.s32.totalorder %s205, %s206
    %p218 = scmp.eq.s32.totalorder %s23, 1
    %p219 = por %p217, %p218
    %p221 = scmp.ne.s32.totalorder %s206, %s220
    %p222 = scmp.eq.s32.totalorder %s23, 0
    %p223 = por %p221, %p222
    %s225 = sadd.s32 %s224, 1
    %p228 = scmp.eq.s32.totalorder %s17, 1
    %p229 = scmp.ne.s32.totalorder %s224, %s226
    %p230 = scmp.eq.s32.totalorder %s17, 0
    %p231 = por %p229, %p230
    %p232 = scmp.ne.s32.totalorder %s224, %s226
    %p233 = scmp.eq.s32.totalorder %s22, 1
    %p234 = por %p232, %p233
    %p235 = scmp.ne.s32.totalorder %s226, %s227
    %p236 = scmp.eq.s32.totalorder %s22, 0
    %p237 = por %p235, %p236
    %p238 = scmp.ne.s32.totalorder %s226, %s227
    %p239 = scmp.eq.s32.totalorder %s23, 1
    %p240 = por %p238, %p239
    %p242 = scmp.ne.s32.totalorder %s227, %s241
    %p243 = scmp.eq.s32.totalorder %s23, 0
    %p244 = por %p242, %p243
    %s246 = sadd.s32 %s245, 1
    %p249 = scmp.eq.s32.totalorder %s17, 1
    %p250 = scmp.ne.s32.totalorder %s245, %s247
    %p251 = scmp.eq.s32.totalorder %s17, 0
    %p252 = por %p250, %p251
    %p253 = scmp.ne.s32.totalorder %s245, %s247
    %p254 = scmp.eq.s32.totalorder %s22, 1
    %p255 = por %p253, %p254
    %p256 = scmp.ne.s32.totalorder %s247, %s248
    %p257 = scmp.eq.s32.totalorder %s22, 0
    %p258 = por %p256, %p257
    %p259 = scmp.ne.s32.totalorder %s247, %s248
    %p260 = scmp.eq.s32.totalorder %s23, 1
    %p261 = por %p259, %p260
    %p263 = scmp.ne.s32.totalorder %s248, %s262
    %p264 = scmp.eq.s32.totalorder %s23, 0
    %p265 = por %p263, %p264
    %s266 = ssub.s32 %s17, %s24
    %p267 = scmp.eq.s32.totalorder %s266, 0
    %s269 = sadd.s32 %s268, 1
    %s270 = scalar_select %p267, %s268, %s269
    %p273 = pneg %p267
    %p274 = scmp.eq.s32.totalorder %s17, 1
    %p275 = por %p273, %p274
    %p276 = scmp.ne.s32.totalorder %s268, %s271
    %p277 = scmp.eq.s32.totalorder %s17, 0
    %p278 = por %p276, %p277
    %p279 = scmp.ne.s32.totalorder %s268, %s271
    %p280 = scmp.eq.s32.totalorder %s22, 1
    %p281 = por %p279, %p280
    %p282 = scmp.ne.s32.totalorder %s271, %s272
    %p283 = scmp.eq.s32.totalorder %s22, 0
    %p284 = por %p282, %p283
    %p285 = scmp.ne.s32.totalorder %s271, %s272
    %p286 = scmp.eq.s32.totalorder %s23, 1
    %p287 = por %p285, %p286
    %p289 = scmp.ne.s32.totalorder %s272, %s288
    %p290 = scmp.eq.s32.totalorder %s23, 0
    %p291 = por %p289, %p290
    %p292 = scmp.le.s32.totalorder 1, %s17
    %p293 = scmp.lt.s32.totalorder %s17, 3
    %p294 = pnand %p292, %p293
    %p295 = pneg %p294
    // Predicated region
    $region9: #{tpu_custom_call.1} parent=5 // pred_check
      _
    $region10: #{tpu_custom_call.1} parent=5 // pred_check_branch
      %297 = sbr.rel (%p294) target = $region12
    $region11: #{tpu_custom_call.1} parent=5 // pred_region
      %s298 = ssub.s32 %s17, 1
      // Predicated region
      $region13: #{tpu_custom_call.1} parent=11 // pred_check
        %p299 = pneg %p90
      $region14: #{tpu_custom_call.1} parent=11 // pred_check_branch
        %301 = sbr.rel (%p299) target = $region16
      $region15: #{tpu_custom_call.1} parent=11 // pred_region
        _
      $region16: #{tpu_custom_call.1} parent=11 // pred_fallthru
        _
      // Predicated region
      $region17: #{tpu_custom_call.1} parent=11 // pred_check
        %p302 = pneg %p111
      $region18: #{tpu_custom_call.1} parent=11 // pred_check_branch
        %304 = sbr.rel (%p302) target = $region20
      $region19: #{tpu_custom_call.1} parent=11 // pred_region
        _
      $region20: #{tpu_custom_call.1} parent=11 // pred_fallthru
        _
      // Predicated region
      $region21: #{tpu_custom_call.1} parent=11 // pred_check
        %p305 = pneg %p132
      $region22: #{tpu_custom_call.1} parent=11 // pred_check_branch
        %307 = sbr.rel (%p305) target = $region24
      $region23: #{tpu_custom_call.1} parent=11 // pred_region
        _
      $region24: #{tpu_custom_call.1} parent=11 // pred_fallthru
        _
      // Predicated region
      $region25: #{tpu_custom_call.1} parent=11 // pred_check
        %p308 = pneg %p153
      $region26: #{tpu_custom_call.1} parent=11 // pred_check_branch
        %310 = sbr.rel (%p308) target = $region28
      $region27: #{tpu_custom_call.1} parent=11 // pred_region
        _
      $region28: #{tpu_custom_call.1} parent=11 // pred_fallthru
        _
      // Predicated region
      $region29: #{tpu_custom_call.1} parent=11 // pred_check
        %p311 = pneg %p174
      $region30: #{tpu_custom_call.1} parent=11 // pred_check_branch
        %313 = sbr.rel (%p311) target = $region32
      $region31: #{tpu_custom_call.1} parent=11 // pred_region
        _
      $region32: #{tpu_custom_call.1} parent=11 // pred_fallthru
        _
      // Predicated region
      $region33: #{tpu_custom_call.1} parent=11 // pred_check
        %p314 = pneg %p195
      $region34: #{tpu_custom_call.1} parent=11 // pred_check_branch
        %316 = sbr.rel (%p314) target = $region36
      $region35: #{tpu_custom_call.1} parent=11 // pred_region
        _
      $region36: #{tpu_custom_call.1} parent=11 // pred_fallthru
        _
      // Predicated region
      $region37: #{tpu_custom_call.1} parent=11 // pred_check
        %p317 = pneg %p216
      $region38: #{tpu_custom_call.1} parent=11 // pred_check_branch
        %319 = sbr.rel (%p317) target = $region40
      $region39: #{tpu_custom_call.1} parent=11 // pred_region
        _
      $region40: #{tpu_custom_call.1} parent=11 // pred_fallthru
        _
      // Predicated region
      $region41: #{tpu_custom_call.1} parent=11 // pred_check
        %p320 = pneg %p237
      $region42: #{tpu_custom_call.1} parent=11 // pred_check_branch
        %322 = sbr.rel (%p320) target = $region44
      $region43: #{tpu_custom_call.1} parent=11 // pred_region
        _
      $region44: #{tpu_custom_call.1} parent=11 // pred_fallthru
        _
      // Predicated region
      $region45: #{tpu_custom_call.1} parent=11 // pred_check
        %p323 = pneg %p258
      $region46: #{tpu_custom_call.1} parent=11 // pred_check_branch
        %325 = sbr.rel (%p323) target = $region48
      $region47: #{tpu_custom_call.1} parent=11 // pred_region
        _
      $region48: #{tpu_custom_call.1} parent=11 // pred_fallthru
        _
    $region12: #{tpu_custom_call.1} parent=5 // pred_fallthru
      _
    %p326 = scmp.lt.s32.totalorder %s17, 2
    // Predicated region
    $region49: #{tpu_custom_call.1} parent=5 // pred_check
      %p327 = pneg %p326
    $region50: #{tpu_custom_call.1} parent=5 // pred_check_branch
      %329 = sbr.rel (%p327) target = $region52
    $region51: #{tpu_custom_call.1} parent=5 // pred_region
      // Predicated region
      $region53: #{tpu_custom_call.1} parent=51 // pred_check
        %p330 = pneg %p37
      $region54: #{tpu_custom_call.1} parent=51 // pred_check_branch
        %332 = sbr.rel (%p330) target = $region56
      $region55: #{tpu_custom_call.1} parent=51 // pred_region
        %s333 = smul.u32 16, %s17
        %p334 = scmp.lt.s32.totalorder %s333, 31
        %s335 = scalar_select %p334, %s333, 31
        %s336 = smul.addr %s335, 8
        %s337 = scalar_lea.vmem %s0, %s336
        %s338 = smul.u32 16, %s17
      $region56: #{tpu_custom_call.1} parent=51 // pred_fallthru
        _
      // Predicated region
      $region57: #{tpu_custom_call.1} parent=51 // pred_check
        %p339 = pneg %p63
      $region58: #{tpu_custom_call.1} parent=51 // pred_check_branch
        %341 = sbr.rel (%p339) target = $region60
      $region59: #{tpu_custom_call.1} parent=51 // pred_region
        %s342 = smul.u32 16, %s17
        %p343 = scmp.lt.s32.totalorder %s342, 31
        %s344 = scalar_select %p343, %s342, 31
        %s345 = smul.addr %s344, 8
        %s346 = scalar_lea.vmem %s1, %s345
        %s347 = smul.u32 16, %s17
      $region60: #{tpu_custom_call.1} parent=51 // pred_fallthru
        _
    $region52: #{tpu_custom_call.1} parent=5 // pred_fallthru
      _
    %p348 = scmp.le.s32.totalorder 1, %s17
    %p349 = scmp.lt.s32.totalorder %s17, 3
    %p350 = pnand %p348, %p349
    %p351 = pneg %p350
    // Predicated region
    $region61: #{tpu_custom_call.1} parent=5 // pred_check
      _
    $region62: #{tpu_custom_call.1} parent=5 // pred_check_branch
      %353 = sbr.rel (%p350) target = $region64
    $region63: #{tpu_custom_call.1} parent=5 // pred_region
      %s354 = ssub.s32 %s17, 1
      %s355 = smul.u32 16, %s22
      %p356 = scmp.lt.s32.totalorder %s355, 31
      %s357 = scalar_select %p356, %s355, 31
      %s358 = smul.addr %s357, 8
      %s359 = scalar_lea.vmem %s0, %s358
      %p360 = pneg %p43
      %p361 = pneg %p40
      %s362 = smul.u32 16, %s22
      %p363 = scmp.lt.s32.totalorder %s362, 31
      %s364 = scalar_select %p363, %s362, 31
      %s365 = smul.addr %s364, 8
      %s366 = scalar_lea.vmem %s1, %s365
      %p367 = pneg %p69
      %p368 = pneg %p66
      %p369 = pneg %p90
      %p370 = pneg %p87
      %p371 = pneg %p111
      %p372 = pneg %p108
      %p373 = pneg %p132
      %p374 = pneg %p129
      %p375 = pneg %p153
      %p376 = pneg %p150
      %p377 = pneg %p174
      %p378 = pneg %p171
      %p379 = pneg %p195
      %p380 = pneg %p192
      %p381 = pneg %p216
      %p382 = pneg %p213
      %p383 = pneg %p237
      %p384 = pneg %p234
      %p385 = pneg %p258
      %p386 = pneg %p255
      %p387 = pneg %p284
      %p388 = pneg %p281
      %s389 = smul.u32 16, %s22
      %p390 = scmp.lt.s32.totalorder %s389, 31
      %s391 = scalar_select %p390, %s389, 31
      %s392 = smul.addr %s391, 8
      %s393 = scalar_lea.vmem %s11, %s392
      %s394 = smul.u32 16, %s22
      %p395 = scmp.lt.s32.totalorder %s394, 31
      %s396 = scalar_select %p395, %s394, 31
      %s397 = smul.addr %s396, 8
      %s398 = scalar_lea.vmem %s0, %s397
      %s399 = smul.u32 16, %s22
      %s400 = smul.u32 16, %s22
      %p401 = scmp.lt.s32.totalorder %s400, 31
      %s402 = scalar_select %p401, %s400, 31
      %s403 = smul.addr %s402, 8
      %s404 = scalar_lea.vmem %s1, %s403
      %s405 = smul.u32 16, %s22
      %s406 = smul.u32 16, %s22
      %p407 = scmp.lt.s32.totalorder %s406, 31
      %s408 = scalar_select %p407, %s406, 31
      %s409 = smul.addr %s408, 8
      %s410 = scalar_lea.vmem %s11, %s409
      %s411 = smul.u32 16, %s22
      %v413 = vld [vmem:[%s404] sm:$0xff]
      %v414 = vld [vmem:[%s404 + $0x8] sm:$0xff]
      %v415 = vld [vmem:[%s404 + $0x10] sm:$0xff]
      %v416 = vld [vmem:[%s404 + $0x18] sm:$0xff]
      %v417 = vld [vmem:[%s404 + $0x20] sm:$0xff]
      %v418 = vld [vmem:[%s404 + $0x28] sm:$0xff]
      %v419 = vld [vmem:[%s404 + $0x30] sm:$0xff]
      %v420 = vld [vmem:[%s404 + $0x38] sm:$0xff]
      %v421 = vld [vmem:[%s404 + $0x40] sm:$0xff]
      %v422 = vld [vmem:[%s404 + $0x48] sm:$0xff]
      %v423 = vld [vmem:[%s404 + $0x50] sm:$0xff]
      %v424 = vld [vmem:[%s404 + $0x58] sm:$0xff]
      %v425 = vld [vmem:[%s404 + $0x60] sm:$0xff]
      %v426 = vld [vmem:[%s404 + $0x68] sm:$0xff]
      %v427 = vld [vmem:[%s404 + $0x70] sm:$0xff]
      %v428 = vld [vmem:[%s404 + $0x78] sm:$0xff]
      %v429 = vlaneseq
      %v430 = vand.u32 %v429, 127
      %431 = vset.pattern.permute.xlu0 0
      %432 = vperm.xlu0 %431, %v413
      %v433 = vpop.permute.xlu0 %432
      %434 = vset.pattern.permute.xlu0 0
      %435 = vperm.xlu0 %434, %v414
      %v436 = vpop.permute.xlu0 %435
      %437 = vset.pattern.permute.xlu0 0
      %438 = vperm.xlu0 %437, %v415
      %v439 = vpop.permute.xlu0 %438
      %440 = vset.pattern.permute.xlu0 0
      %441 = vperm.xlu0 %440, %v416
      %v442 = vpop.permute.xlu0 %441
      %443 = vset.pattern.permute.xlu0 0
      %444 = vperm.xlu0 %443, %v417
      %v445 = vpop.permute.xlu0 %444
      %446 = vset.pattern.permute.xlu0 0
      %447 = vperm.xlu0 %446, %v418
      %v448 = vpop.permute.xlu0 %447
      %449 = vset.pattern.permute.xlu0 0
      %450 = vperm.xlu0 %449, %v419
      %v451 = vpop.permute.xlu0 %450
      %452 = vset.pattern.permute.xlu0 0
      %453 = vperm.xlu0 %452, %v420
      %v454 = vpop.permute.xlu0 %453
      %455 = vset.pattern.permute.xlu0 0
      %456 = vperm.xlu0 %455, %v421
      %v457 = vpop.permute.xlu0 %456
      %458 = vset.pattern.permute.xlu0 0
      %459 = vperm.xlu0 %458, %v422
      %v460 = vpop.permute.xlu0 %459
      %461 = vset.pattern.permute.xlu0 0
      %462 = vperm.xlu0 %461, %v423
      %v463 = vpop.permute.xlu0 %462
      %464 = vset.pattern.permute.xlu0 0
      %465 = vperm.xlu0 %464, %v424
      %v466 = vpop.permute.xlu0 %465
      %467 = vset.pattern.permute.xlu0 0
      %468 = vperm.xlu0 %467, %v425
      %v469 = vpop.permute.xlu0 %468
      %470 = vset.pattern.permute.xlu0 0
      %471 = vperm.xlu0 %470, %v426
      %v472 = vpop.permute.xlu0 %471
      %473 = vset.pattern.permute.xlu0 0
      %474 = vperm.xlu0 %473, %v427
      %v475 = vpop.permute.xlu0 %474
      %476 = vset.pattern.permute.xlu0 0
      %477 = vperm.xlu0 %476, %v428
      %v478 = vpop.permute.xlu0 %477
      %vm479 = vcmp.eq.s32.totalorder %v430, %v433
      %vm480 = vcmp.eq.s32.totalorder %v430, %v436
      %vm481 = vcmp.eq.s32.totalorder %v430, %v439
      %vm482 = vcmp.eq.s32.totalorder %v430, %v442
      %vm483 = vcmp.eq.s32.totalorder %v430, %v445
      %vm484 = vcmp.eq.s32.totalorder %v430, %v448
      %vm485 = vcmp.eq.s32.totalorder %v430, %v451
      %vm486 = vcmp.eq.s32.totalorder %v430, %v454
      %vm487 = vcmp.eq.s32.totalorder %v430, %v457
      %vm488 = vcmp.eq.s32.totalorder %v430, %v460
      %vm489 = vcmp.eq.s32.totalorder %v430, %v463
      %vm490 = vcmp.eq.s32.totalorder %v430, %v466
      %vm491 = vcmp.eq.s32.totalorder %v430, %v469
      %vm492 = vcmp.eq.s32.totalorder %v430, %v472
      %vm493 = vcmp.eq.s32.totalorder %v430, %v475
      %vm494 = vcmp.eq.s32.totalorder %v430, %v478
      %v495 = vsel %vm479, 1, 0
      %v496 = vsel %vm480, 1, 0
      %v497 = vsel %vm481, 1, 0
      %v498 = vsel %vm482, 1, 0
      %v499 = vsel %vm483, 1, 0
      %v500 = vsel %vm484, 1, 0
      %v501 = vsel %vm485, 1, 0
      %v502 = vsel %vm486, 1, 0
      %v503 = vsel %vm487, 1, 0
      %v504 = vsel %vm488, 1, 0
      %v505 = vsel %vm489, 1, 0
      %v506 = vsel %vm490, 1, 0
      %v507 = vsel %vm491, 1, 0
      %v508 = vsel %vm492, 1, 0
      %v509 = vsel %vm493, 1, 0
      %v510 = vsel %vm494, 1, 0
      %v511 = vcvt.s32.f32 %v495
      %v512 = vcvt.s32.f32 %v496
      %v513 = vcvt.s32.f32 %v497
      %v514 = vcvt.s32.f32 %v498
      %v515 = vcvt.s32.f32 %v499
      %v516 = vcvt.s32.f32 %v500
      %v517 = vcvt.s32.f32 %v501
      %v518 = vcvt.s32.f32 %v502
      %v519 = vcvt.s32.f32 %v503
      %v520 = vcvt.s32.f32 %v504
      %v521 = vcvt.s32.f32 %v505
      %v522 = vcvt.s32.f32 %v506
      %v523 = vcvt.s32.f32 %v507
      %v524 = vcvt.s32.f32 %v508
      %v525 = vcvt.s32.f32 %v509
      %v526 = vcvt.s32.f32 %v510
      %v527 = vld [vmem:[%s2] sm:$0xff]
      %v528 = vld [vmem:[%s2 + $0x8] sm:$0xff]
      %v529 = vld [vmem:[%s2 + $0x10] sm:$0xff]
      %v530 = vld [vmem:[%s2 + $0x18] sm:$0xff]
      %v531 = vld [vmem:[%s2 + $0x20] sm:$0xff]
      %v532 = vld [vmem:[%s2 + $0x28] sm:$0xff]
      %v533 = vld [vmem:[%s2 + $0x30] sm:$0xff]
      %v534 = vld [vmem:[%s2 + $0x38] sm:$0xff]
      %v535 = vld [vmem:[%s2 + $0x40] sm:$0xff]
      %v536 = vld [vmem:[%s2 + $0x48] sm:$0xff]
      %v537 = vld [vmem:[%s2 + $0x50] sm:$0xff]
      %v538 = vld [vmem:[%s2 + $0x58] sm:$0xff]
      %v539 = vld [vmem:[%s2 + $0x60] sm:$0xff]
      %v540 = vld [vmem:[%s2 + $0x68] sm:$0xff]
      %v541 = vld [vmem:[%s2 + $0x70] sm:$0xff]
      %v542 = vld [vmem:[%s2 + $0x78] sm:$0xff]
      %v543 = vld [vmem:[%s2 + $0x80] sm:$0xff]
      %v544 = vld [vmem:[%s2 + $0x88] sm:$0xff]
      %v545 = vld [vmem:[%s2 + $0x90] sm:$0xff]
      %v546 = vld [vmem:[%s2 + $0x98] sm:$0xff]
      %v547 = vld [vmem:[%s2 + $0xa0] sm:$0xff]
      %vm548 = vcmask 457728
      %v550 = vsel %vm548, %v511, 0
      %v553 = vsel %vm548, %v512, 0
      %v556 = vsel %vm548, %v513, 0
      %v559 = vsel %vm548, %v514, 0
      %v562 = vsel %vm548, %v515, 0
      %v565 = vsel %vm548, %v516, 0
      %v568 = vsel %vm548, %v517, 0
      %v571 = vsel %vm548, %v518, 0
      %v574 = vsel %vm548, %v519, 0
      %v577 = vsel %vm548, %v520, 0
      %v580 = vsel %vm548, %v521, 0
      %v583 = vsel %vm548, %v522, 0
      %v586 = vsel %vm548, %v523, 0
      %v589 = vsel %vm548, %v524, 0
      %v592 = vsel %vm548, %v525, 0
      %v595 = vsel %vm548, %v526, 0
      %597 = vmatprep.subr.mxu0 0.0
      %598 = vmatpush1.msra.mxu0 0.0
      %599 = vmatprep.subr.mxu0 0.0
      %600 = vmatpush1.msra.mxu0 0.0
      %601 = vmatprep.subr.mxu0 0.0
      %602 = vmatpush1.msra.mxu0 0.0
      %603 = vmatprep.subr.mxu0 0.0
      %604 = vmatpush1.msra.mxu0 0.0
      %605 = vmatprep.subr.mxu0 0.0
      %606 = vmatpush1.msra.mxu0 0.0
      %607 = vmatprep.subr.mxu0 0.0
      %608 = vmatpush1.msra.mxu0 0.0
      %609 = vmatprep.subr.mxu0 0.0
      %610 = vmatpush1.msra.mxu0 0.0
      %611 = vmatprep.subr.mxu0 0.0
      %612 = vmatpush1.msra.mxu0 0.0
      %613 = vmatprep.subr.mxu0 0.0
      %614 = vmatpush1.msra.mxu0 0.0
      %615 = vmatprep.subr.mxu0 %v546
      %616 = vmatpush1.msra.mxu0 %v545
      %617 = vmatprep.subr.mxu0 %v543
      %618 = vmatpush1.msra.mxu0 %v542
      %619 = vmatprep.subr.mxu0 %v540
      %620 = vmatpush1.msra.mxu0 %v539
      %621 = vmatprep.subr.mxu0 %v537
      %622 = vmatpush1.msra.mxu0 %v536
      %623 = vmatprep.subr.mxu0 %v534
      %624 = vmatpush1.msra.mxu0 %v533
      %625 = vmatprep.subr.mxu0 %v531
      %626 = vmatpush1.msra.mxu0 %v530
      %627 = vmatprep.subr.mxu0 %v528
      %628 = vmatpush1.msra.mxu0 %v527
      %629 = vmatprep.subr.mxu0 0.0
      %630 = vmatpush2.msra.mxu0 0.0
      %631 = vmatprep.subr.mxu0 0.0
      %632 = vmatpush2.msra.mxu0 0.0
      %633 = vmatprep.subr.mxu0 0.0
      %634 = vmatpush2.msra.mxu0 0.0
      %635 = vmatprep.subr.mxu0 0.0
      %636 = vmatpush2.msra.mxu0 0.0
      %637 = vmatprep.subr.mxu0 0.0
      %638 = vmatpush2.msra.mxu0 0.0
      %639 = vmatprep.subr.mxu0 0.0
      %640 = vmatpush2.msra.mxu0 0.0
      %641 = vmatprep.subr.mxu0 0.0
      %642 = vmatpush2.msra.mxu0 0.0
      %643 = vmatprep.subr.mxu0 0.0
      %644 = vmatpush2.msra.mxu0 0.0
      %645 = vmatprep.subr.mxu0 0.0
      %646 = vmatpush2.msra.mxu0 0.0
      %647 = vmatprep.subr.mxu0 0.0
      %648 = vmatpush2.msra.mxu0 0.0
      %649 = vmatprep.subr.mxu0 0.0
      %650 = vmatpush2.msra.mxu0 0.0
      %651 = vmatprep.subr.mxu0 0.0
      %652 = vmatpush2.msra.mxu0 0.0
      %653 = vmatprep.subr.mxu0 0.0
      %654 = vmatpush2.msra.mxu0 0.0
      %655 = vmatprep.subr.mxu0 0.0
      %656 = vmatpush2.msra.mxu0 0.0
      %657 = vmatprep.subr.mxu0 0.0
      %658 = vmatpush2.msra.mxu0 0.0
      %659 = vmatprep.subr.mxu0 0.0
      %660 = vmatpush2.msra.mxu0 0.0
      %661 = vmatprep.mubr.f32.mxu0 0.0
      %662 = vmatmul.mubr.f32.gmra.mxu0 %v550
      %v663 = vpop.f32.mrf.mxu0
      %v664 = vadd.f32 0.0, %v663
      %v665 = vpop.f32.mrf.mxu0
      %v666 = vadd.f32 0.0, %v665
      %667 = vmatprep.mubr.f32.mxu0 0.0
      %668 = vmatmul.mubr.f32.gmra.mxu0 %v553
      %v669 = vpop.f32.mrf.mxu0
      %v670 = vadd.f32 0.0, %v669
      %v671 = vpop.f32.mrf.mxu0
      %v672 = vadd.f32 0.0, %v671
      %673 = vmatprep.mubr.f32.mxu0 0.0
      %674 = vmatmul.mubr.f32.gmra.mxu0 %v556
      %v675 = vpop.f32.mrf.mxu0
      %v676 = vadd.f32 0.0, %v675
      %v677 = vpop.f32.mrf.mxu0
      %v678 = vadd.f32 0.0, %v677
      %679 = vmatprep.mubr.f32.mxu0 0.0
      %680 = vmatmul.mubr.f32.gmra.mxu0 %v559
      %v681 = vpop.f32.mrf.mxu0
      %v682 = vadd.f32 0.0, %v681
      %v683 = vpop.f32.mrf.mxu0
      %v684 = vadd.f32 0.0, %v683
      %685 = vmatprep.mubr.f32.mxu0 0.0
      %686 = vmatmul.mubr.f32.gmra.mxu0 %v562
      %v687 = vpop.f32.mrf.mxu0
      %v688 = vadd.f32 0.0, %v687
      %v689 = vpop.f32.mrf.mxu0
      %v690 = vadd.f32 0.0, %v689
      %691 = vmatprep.mubr.f32.mxu0 0.0
      %692 = vmatmul.mubr.f32.gmra.mxu0 %v565
      %v693 = vpop.f32.mrf.mxu0
      %v694 = vadd.f32 0.0, %v693
      %v695 = vpop.f32.mrf.mxu0
      %v696 = vadd.f32 0.0, %v695
      %697 = vmatprep.mubr.f32.mxu0 0.0
      %698 = vmatmul.mubr.f32.gmra.mxu0 %v568
      %v699 = vpop.f32.mrf.mxu0
      %v700 = vadd.f32 0.0, %v699
      %v701 = vpop.f32.mrf.mxu0
      %v702 = vadd.f32 0.0, %v701
      %703 = vmatprep.mubr.f32.mxu0 0.0
      %704 = vmatmul.mubr.f32.gmra.mxu0 %v571
      %v705 = vpop.f32.mrf.mxu0
      %v706 = vadd.f32 0.0, %v705
      %v707 = vpop.f32.mrf.mxu0
      %v708 = vadd.f32 0.0, %v707
      %709 = vmatprep.mubr.f32.mxu0 0.0
      %710 = vmatmul.mubr.f32.gmra.mxu0 %v574
      %v711 = vpop.f32.mrf.mxu0
      %v712 = vadd.f32 0.0, %v711
      %v713 = vpop.f32.mrf.mxu0
      %v714 = vadd.f32 0.0, %v713
      %715 = vmatprep.mubr.f32.mxu0 0.0
      %716 = vmatmul.mubr.f32.gmra.mxu0 %v577
      %v717 = vpop.f32.mrf.mxu0
      %v718 = vadd.f32 0.0, %v717
      %v719 = vpop.f32.mrf.mxu0
      %v720 = vadd.f32 0.0, %v719
      %721 = vmatprep.mubr.f32.mxu0 0.0
      %722 = vmatmul.mubr.f32.gmra.mxu0 %v580
      %v723 = vpop.f32.mrf.mxu0
      %v724 = vadd.f32 0.0, %v723
      %v725 = vpop.f32.mrf.mxu0
      %v726 = vadd.f32 0.0, %v725
      %727 = vmatprep.mubr.f32.mxu0 0.0
      %728 = vmatmul.mubr.f32.gmra.mxu0 %v583
      %v729 = vpop.f32.mrf.mxu0
      %v730 = vadd.f32 0.0, %v729
      %v731 = vpop.f32.mrf.mxu0
      %v732 = vadd.f32 0.0, %v731
      %733 = vmatprep.mubr.f32.mxu0 0.0
      %734 = vmatmul.mubr.f32.gmra.mxu0 %v586
      %v735 = vpop.f32.mrf.mxu0
      %v736 = vadd.f32 0.0, %v735
      %v737 = vpop.f32.mrf.mxu0
      %v738 = vadd.f32 0.0, %v737
      %739 = vmatprep.mubr.f32.mxu0 0.0
      %740 = vmatmul.mubr.f32.gmra.mxu0 %v589
      %v741 = vpop.f32.mrf.mxu0
      %v742 = vadd.f32 0.0, %v741
      %v743 = vpop.f32.mrf.mxu0
      %v744 = vadd.f32 0.0, %v743
      %745 = vmatprep.mubr.f32.mxu0 0.0
      %746 = vmatmul.mubr.f32.gmra.mxu0 %v592
      %v747 = vpop.f32.mrf.mxu0
      %v748 = vadd.f32 0.0, %v747
      %v749 = vpop.f32.mrf.mxu0
      %v750 = vadd.f32 0.0, %v749
      %751 = vmatprep.mubr.f32.mxu0 0.0
      %752 = vmatmul.mubr.f32.gmra.mxu0 %v595
      %v753 = vpop.f32.mrf.mxu0
      %v754 = vadd.f32 0.0, %v753
      %v755 = vpop.f32.mrf.mxu0
      %v756 = vadd.f32 0.0, %v755
      %757 = vdwg.mxu0
      %758 = vmatprep.subr.mxu0 0.0
      %759 = vmatpush1.msra.mxu0 0.0
      %760 = vmatprep.subr.mxu0 0.0
      %761 = vmatpush1.msra.mxu0 0.0
      %762 = vmatprep.subr.mxu0 0.0
      %763 = vmatpush1.msra.mxu0 0.0
      %764 = vmatprep.subr.mxu0 0.0
      %765 = vmatpush1.msra.mxu0 0.0
      %766 = vmatprep.subr.mxu0 0.0
      %767 = vmatpush1.msra.mxu0 0.0
      %768 = vmatprep.subr.mxu0 0.0
      %769 = vmatpush1.msra.mxu0 0.0
      %770 = vmatprep.subr.mxu0 0.0
      %771 = vmatpush1.msra.mxu0 0.0
      %772 = vmatprep.subr.mxu0 0.0
      %773 = vmatpush1.msra.mxu0 0.0
      %774 = vmatprep.subr.mxu0 0.0
      %775 = vmatpush1.msra.mxu0 0.0
      %776 = vmatprep.subr.mxu0 0.0
      %777 = vmatpush1.msra.mxu0 %v547
      %778 = vmatprep.subr.mxu0 0.0
      %779 = vmatpush1.msra.mxu0 %v544
      %780 = vmatprep.subr.mxu0 0.0
      %781 = vmatpush1.msra.mxu0 %v541
      %782 = vmatprep.subr.mxu0 0.0
      %783 = vmatpush1.msra.mxu0 %v538
      %784 = vmatprep.subr.mxu0 0.0
      %785 = vmatpush1.msra.mxu0 %v535
      %786 = vmatprep.subr.mxu0 0.0
      %787 = vmatpush1.msra.mxu0 %v532
      %788 = vmatprep.subr.mxu0 0.0
      %789 = vmatpush1.msra.mxu0 %v529
      %790 = vmatprep.subr.mxu0 0.0
      %791 = vmatpush2.msra.mxu0 0.0
      %792 = vmatprep.subr.mxu0 0.0
      %793 = vmatpush2.msra.mxu0 0.0
      %794 = vmatprep.subr.mxu0 0.0
      %795 = vmatpush2.msra.mxu0 0.0
      %796 = vmatprep.subr.mxu0 0.0
      %797 = vmatpush2.msra.mxu0 0.0
      %798 = vmatprep.subr.mxu0 0.0
      %799 = vmatpush2.msra.mxu0 0.0
      %800 = vmatprep.subr.mxu0 0.0
      %801 = vmatpush2.msra.mxu0 0.0
      %802 = vmatprep.subr.mxu0 0.0
      %803 = vmatpush2.msra.mxu0 0.0
      %804 = vmatprep.subr.mxu0 0.0
      %805 = vmatpush2.msra.mxu0 0.0
      %806 = vmatprep.subr.mxu0 0.0
      %807 = vmatpush2.msra.mxu0 0.0
      %808 = vmatprep.subr.mxu0 0.0
      %809 = vmatpush2.msra.mxu0 0.0
      %810 = vmatprep.subr.mxu0 0.0
      %811 = vmatpush2.msra.mxu0 0.0
      %812 = vmatprep.subr.mxu0 0.0
      %813 = vmatpush2.msra.mxu0 0.0
      %814 = vmatprep.subr.mxu0 0.0
      %815 = vmatpush2.msra.mxu0 0.0
      %816 = vmatprep.subr.mxu0 0.0
      %817 = vmatpush2.msra.mxu0 0.0
      %818 = vmatprep.subr.mxu0 0.0
      %819 = vmatpush2.msra.mxu0 0.0
      %820 = vmatprep.subr.mxu0 0.0
      %821 = vmatpush2.msra.mxu0 0.0
      %822 = vmatprep.mubr.f32.mxu0 0.0
      %823 = vmatmul.mubr.f32.gmra.mxu0 %v550
      %v824 = vpop.f32.mrf.mxu0
      %v825 = vadd.f32 0.0, %v824
      %v826 = vpop.f32.mrf.mxu0
      %827 = vmatprep.mubr.f32.mxu0 0.0
      %828 = vmatmul.mubr.f32.gmra.mxu0 %v553
      %v829 = vpop.f32.mrf.mxu0
      %v830 = vadd.f32 0.0, %v829
      %v831 = vpop.f32.mrf.mxu0
      %832 = vmatprep.mubr.f32.mxu0 0.0
      %833 = vmatmul.mubr.f32.gmra.mxu0 %v556
      %v834 = vpop.f32.mrf.mxu0
      %v835 = vadd.f32 0.0, %v834
      %v836 = vpop.f32.mrf.mxu0
      %837 = vmatprep.mubr.f32.mxu0 0.0
      %838 = vmatmul.mubr.f32.gmra.mxu0 %v559
      %v839 = vpop.f32.mrf.mxu0
      %v840 = vadd.f32 0.0, %v839
      %v841 = vpop.f32.mrf.mxu0
      %842 = vmatprep.mubr.f32.mxu0 0.0
      %843 = vmatmul.mubr.f32.gmra.mxu0 %v562
      %v844 = vpop.f32.mrf.mxu0
      %v845 = vadd.f32 0.0, %v844
      %v846 = vpop.f32.mrf.mxu0
      %847 = vmatprep.mubr.f32.mxu0 0.0
      %848 = vmatmul.mubr.f32.gmra.mxu0 %v565
      %v849 = vpop.f32.mrf.mxu0
      %v850 = vadd.f32 0.0, %v849
      %v851 = vpop.f32.mrf.mxu0
      %852 = vmatprep.mubr.f32.mxu0 0.0
      %853 = vmatmul.mubr.f32.gmra.mxu0 %v568
      %v854 = vpop.f32.mrf.mxu0
      %v855 = vadd.f32 0.0, %v854
      %v856 = vpop.f32.mrf.mxu0
      %857 = vmatprep.mubr.f32.mxu0 0.0
      %858 = vmatmul.mubr.f32.gmra.mxu0 %v571
      %v859 = vpop.f32.mrf.mxu0
      %v860 = vadd.f32 0.0, %v859
      %v861 = vpop.f32.mrf.mxu0
      %862 = vmatprep.mubr.f32.mxu0 0.0
      %863 = vmatmul.mubr.f32.gmra.mxu0 %v574
      %v864 = vpop.f32.mrf.mxu0
      %v865 = vadd.f32 0.0, %v864
      %v866 = vpop.f32.mrf.mxu0
      %867 = vmatprep.mubr.f32.mxu0 0.0
      %868 = vmatmul.mubr.f32.gmra.mxu0 %v577
      %v869 = vpop.f32.mrf.mxu0
      %v870 = vadd.f32 0.0, %v869
      %v871 = vpop.f32.mrf.mxu0
      %872 = vmatprep.mubr.f32.mxu0 0.0
      %873 = vmatmul.mubr.f32.gmra.mxu0 %v580
      %v874 = vpop.f32.mrf.mxu0
      %v875 = vadd.f32 0.0, %v874
      %v876 = vpop.f32.mrf.mxu0
      %877 = vmatprep.mubr.f32.mxu0 0.0
      %878 = vmatmul.mubr.f32.gmra.mxu0 %v583
      %v879 = vpop.f32.mrf.mxu0
      %v880 = vadd.f32 0.0, %v879
      %v881 = vpop.f32.mrf.mxu0
      %882 = vmatprep.mubr.f32.mxu0 0.0
      %883 = vmatmul.mubr.f32.gmra.mxu0 %v586
      %v884 = vpop.f32.mrf.mxu0
      %v885 = vadd.f32 0.0, %v884
      %v886 = vpop.f32.mrf.mxu0
      %887 = vmatprep.mubr.f32.mxu0 0.0
      %888 = vmatmul.mubr.f32.gmra.mxu0 %v589
      %v889 = vpop.f32.mrf.mxu0
      %v890 = vadd.f32 0.0, %v889
      %v891 = vpop.f32.mrf.mxu0
      %892 = vmatprep.mubr.f32.mxu0 0.0
      %893 = vmatmul.mubr.f32.gmra.mxu0 %v592
      %v894 = vpop.f32.mrf.mxu0
      %v895 = vadd.f32 0.0, %v894
      %v896 = vpop.f32.mrf.mxu0
      %897 = vmatprep.mubr.f32.mxu0 0.0
      %898 = vmatmul.mubr.f32.gmra.mxu0 %v595
      %v899 = vpop.f32.mrf.mxu0
      %v900 = vadd.f32 0.0, %v899
      %v901 = vpop.f32.mrf.mxu0
      %902 = vdwg.mxu0
      %v903 = vld [vmem:[%s398] sm:$0xff]
      %v904 = vld [vmem:[%s398 + $0x8] sm:$0xff]
      %v905 = vld [vmem:[%s398 + $0x10] sm:$0xff]
      %v906 = vld [vmem:[%s398 + $0x18] sm:$0xff]
      %v907 = vld [vmem:[%s398 + $0x20] sm:$0xff]
      %v908 = vld [vmem:[%s398 + $0x28] sm:$0xff]
      %v909 = vld [vmem:[%s398 + $0x30] sm:$0xff]
      %v910 = vld [vmem:[%s398 + $0x38] sm:$0xff]
      %v911 = vld [vmem:[%s398 + $0x40] sm:$0xff]
      %v912 = vld [vmem:[%s398 + $0x48] sm:$0xff]
      %v913 = vld [vmem:[%s398 + $0x50] sm:$0xff]
      %v914 = vld [vmem:[%s398 + $0x58] sm:$0xff]
      %v915 = vld [vmem:[%s398 + $0x60] sm:$0xff]
      %v916 = vld [vmem:[%s398 + $0x68] sm:$0xff]
      %v917 = vld [vmem:[%s398 + $0x70] sm:$0xff]
      %v918 = vld [vmem:[%s398 + $0x78] sm:$0xff]
      %v919 = vld [vmem:[%s3] sm:$0x3]
      %v920 = vld [vmem:[%s4] sm:$0x1]
      %v922 = vlaneseq
      %v923 = vshrl.u32 %v922, 7
      %v924 = vsub.s32 0, %v923
      %v925 = vrot.slane %v920, %v924
      %vm927 = vcmask 15360
      %v929 = vsel %vm927, %v903, 0
      %v932 = vsel %vm927, %v904, 0
      %v935 = vsel %vm927, %v905, 0
      %v938 = vsel %vm927, %v906, 0
      %v941 = vsel %vm927, %v907, 0
      %v944 = vsel %vm927, %v908, 0
      %v947 = vsel %vm927, %v909, 0
      %v950 = vsel %vm927, %v910, 0
      %v953 = vsel %vm927, %v911, 0
      %v956 = vsel %vm927, %v912, 0
      %v959 = vsel %vm927, %v913, 0
      %v962 = vsel %vm927, %v914, 0
      %v965 = vsel %vm927, %v915, 0
      %v968 = vsel %vm927, %v916, 0
      %v971 = vsel %vm927, %v917, 0
      %v974 = vsel %vm927, %v918, 0
      %vm976 = vcmask 1041408
      %v978 = vsel %vm976, %v919, 0
      %980 = vmatprep.subr.mxu0 0.0
      %981 = vmatpush1.msra.mxu0 0.0
      %982 = vmatprep.subr.mxu0 0.0
      %983 = vmatpush1.msra.mxu0 0.0
      %984 = vmatprep.subr.mxu0 0.0
      %985 = vmatpush1.msra.mxu0 0.0
      %986 = vmatprep.subr.mxu0 0.0
      %987 = vmatpush1.msra.mxu0 0.0
      %988 = vmatprep.subr.mxu0 0.0
      %989 = vmatpush1.msra.mxu0 0.0
      %990 = vmatprep.subr.mxu0 0.0
      %991 = vmatpush1.msra.mxu0 0.0
      %992 = vmatprep.subr.mxu0 0.0
      %993 = vmatpush1.msra.mxu0 0.0
      %994 = vmatprep.subr.mxu0 0.0
      %995 = vmatpush1.msra.mxu0 0.0
      %996 = vmatprep.subr.mxu0 0.0
      %997 = vmatpush1.msra.mxu0 0.0
      %998 = vmatprep.subr.mxu0 0.0
      %999 = vmatpush1.msra.mxu0 0.0
      %1000 = vmatprep.subr.mxu0 0.0
      %1001 = vmatpush1.msra.mxu0 0.0
      %1002 = vmatprep.subr.mxu0 0.0
      %1003 = vmatpush1.msra.mxu0 0.0
      %1004 = vmatprep.subr.mxu0 0.0
      %1005 = vmatpush1.msra.mxu0 0.0
      %1006 = vmatprep.subr.mxu0 0.0
      %1007 = vmatpush1.msra.mxu0 0.0
      %1008 = vmatprep.subr.mxu0 0.0
      %1009 = vmatpush1.msra.mxu0 0.0
      %1010 = vmatprep.subr.mxu0 0.0
      %1011 = vmatpush1.msra.mxu0 %v978
      %1012 = vmatprep.subr.mxu0 0.0
      %1013 = vmatpush2.msra.mxu0 0.0
      %1014 = vmatprep.subr.mxu0 0.0
      %1015 = vmatpush2.msra.mxu0 0.0
      %1016 = vmatprep.subr.mxu0 0.0
      %1017 = vmatpush2.msra.mxu0 0.0
      %1018 = vmatprep.subr.mxu0 0.0
      %1019 = vmatpush2.msra.mxu0 0.0
      %1020 = vmatprep.subr.mxu0 0.0
      %1021 = vmatpush2.msra.mxu0 0.0
      %1022 = vmatprep.subr.mxu0 0.0
      %1023 = vmatpush2.msra.mxu0 0.0
      %1024 = vmatprep.subr.mxu0 0.0
      %1025 = vmatpush2.msra.mxu0 0.0
      %1026 = vmatprep.subr.mxu0 0.0
      %1027 = vmatpush2.msra.mxu0 0.0
      %1028 = vmatprep.subr.mxu0 0.0
      %1029 = vmatpush2.msra.mxu0 0.0
      %1030 = vmatprep.subr.mxu0 0.0
      %1031 = vmatpush2.msra.mxu0 0.0
      %1032 = vmatprep.subr.mxu0 0.0
      %1033 = vmatpush2.msra.mxu0 0.0
      %1034 = vmatprep.subr.mxu0 0.0
      %1035 = vmatpush2.msra.mxu0 0.0
      %1036 = vmatprep.subr.mxu0 0.0
      %1037 = vmatpush2.msra.mxu0 0.0
      %1038 = vmatprep.subr.mxu0 0.0
      %1039 = vmatpush2.msra.mxu0 0.0
      %1040 = vmatprep.subr.mxu0 0.0
      %1041 = vmatpush2.msra.mxu0 0.0
      %1042 = vmatprep.subr.mxu0 0.0
      %1043 = vmatpush2.msra.mxu0 0.0
      %1044 = vmatprep.mubr.f32.mxu0 0.0
      %1045 = vmatmul.mubr.f32.gmra.mxu0 %v929
      %v1046 = vpop.f32.mrf.mxu0
      %v1047 = vadd.f32 %v925, %v1046
      %v1048 = vpop.f32.mrf.mxu0
      %1049 = vmatprep.mubr.f32.mxu0 0.0
      %1050 = vmatmul.mubr.f32.gmra.mxu0 %v932
      %v1051 = vpop.f32.mrf.mxu0
      %v1052 = vadd.f32 %v925, %v1051
      %v1053 = vpop.f32.mrf.mxu0
      %1054 = vmatprep.mubr.f32.mxu0 0.0
      %1055 = vmatmul.mubr.f32.gmra.mxu0 %v935
      %v1056 = vpop.f32.mrf.mxu0
      %v1057 = vadd.f32 %v925, %v1056
      %v1058 = vpop.f32.mrf.mxu0
      %1059 = vmatprep.mubr.f32.mxu0 0.0
      %1060 = vmatmul.mubr.f32.gmra.mxu0 %v938
      %v1061 = vpop.f32.mrf.mxu0
      %v1062 = vadd.f32 %v925, %v1061
      %v1063 = vpop.f32.mrf.mxu0
      %1064 = vmatprep.mubr.f32.mxu0 0.0
      %1065 = vmatmul.mubr.f32.gmra.mxu0 %v941
      %v1066 = vpop.f32.mrf.mxu0
      %v1067 = vadd.f32 %v925, %v1066
      %v1068 = vpop.f32.mrf.mxu0
      %1069 = vmatprep.mubr.f32.mxu0 0.0
      %1070 = vmatmul.mubr.f32.gmra.mxu0 %v944
      %v1071 = vpop.f32.mrf.mxu0
      %v1072 = vadd.f32 %v925, %v1071
      %v1073 = vpop.f32.mrf.mxu0
      %1074 = vmatprep.mubr.f32.mxu0 0.0
      %1075 = vmatmul.mubr.f32.gmra.mxu0 %v947
      %v1076 = vpop.f32.mrf.mxu0
      %v1077 = vadd.f32 %v925, %v1076
      %v1078 = vpop.f32.mrf.mxu0
      %1079 = vmatprep.mubr.f32.mxu0 0.0
      %1080 = vmatmul.mubr.f32.gmra.mxu0 %v950
      %v1081 = vpop.f32.mrf.mxu0
      %v1082 = vadd.f32 %v925, %v1081
      %v1083 = vpop.f32.mrf.mxu0
      %1084 = vmatprep.mubr.f32.mxu0 0.0
      %1085 = vmatmul.mubr.f32.gmra.mxu0 %v953
      %v1086 = vpop.f32.mrf.mxu0
      %v1087 = vadd.f32 %v925, %v1086
      %v1088 = vpop.f32.mrf.mxu0
      %1089 = vmatprep.mubr.f32.mxu0 0.0
      %1090 = vmatmul.mubr.f32.gmra.mxu0 %v956
      %v1091 = vpop.f32.mrf.mxu0
      %v1092 = vadd.f32 %v925, %v1091
      %v1093 = vpop.f32.mrf.mxu0
      %1094 = vmatprep.mubr.f32.mxu0 0.0
      %1095 = vmatmul.mubr.f32.gmra.mxu0 %v959
      %v1096 = vpop.f32.mrf.mxu0
      %v1097 = vadd.f32 %v925, %v1096
      %v1098 = vpop.f32.mrf.mxu0
      %1099 = vmatprep.mubr.f32.mxu0 0.0
      %1100 = vmatmul.mubr.f32.gmra.mxu0 %v962
      %v1101 = vpop.f32.mrf.mxu0
      %v1102 = vadd.f32 %v925, %v1101
      %v1103 = vpop.f32.mrf.mxu0
      %1104 = vmatprep.mubr.f32.mxu0 0.0
      %1105 = vmatmul.mubr.f32.gmra.mxu0 %v965
      %v1106 = vpop.f32.mrf.mxu0
      %v1107 = vadd.f32 %v925, %v1106
      %v1108 = vpop.f32.mrf.mxu0
      %1109 = vmatprep.mubr.f32.mxu0 0.0
      %1110 = vmatmul.mubr.f32.gmra.mxu0 %v968
      %v1111 = vpop.f32.mrf.mxu0
      %v1112 = vadd.f32 %v925, %v1111
      %v1113 = vpop.f32.mrf.mxu0
      %1114 = vmatprep.mubr.f32.mxu0 0.0
      %1115 = vmatmul.mubr.f32.gmra.mxu0 %v971
      %v1116 = vpop.f32.mrf.mxu0
      %v1117 = vadd.f32 %v925, %v1116
      %v1118 = vpop.f32.mrf.mxu0
      %1119 = vmatprep.mubr.f32.mxu0 0.0
      %1120 = vmatmul.mubr.f32.gmra.mxu0 %v974
      %v1121 = vpop.f32.mrf.mxu0
      %v1122 = vadd.f32 %v925, %v1121
      %v1123 = vpop.f32.mrf.mxu0
      %1124 = vdwg.mxu0
      %v1125 = vadd.f32 %v1047, %v664
      %v1126 = vadd.f32 %v1052, %v670
      %v1127 = vadd.f32 %v1057, %v676
      %v1128 = vadd.f32 %v1062, %v682
      %v1129 = vadd.f32 %v1067, %v688
      %v1130 = vadd.f32 %v1072, %v694
      %v1131 = vadd.f32 %v1077, %v700
      %v1132 = vadd.f32 %v1082, %v706
      %v1133 = vadd.f32 %v1087, %v712
      %v1134 = vadd.f32 %v1092, %v718
      %v1135 = vadd.f32 %v1097, %v724
      %v1136 = vadd.f32 %v1102, %v730
      %v1137 = vadd.f32 %v1107, %v736
      %v1138 = vadd.f32 %v1112, %v742
      %v1139 = vadd.f32 %v1117, %v748
      %v1140 = vadd.f32 %v1122, %v754
      %v1141 = vmax.f32 %v1125, 0.0
      %v1142 = vmax.f32 %v1126, 0.0
      %v1143 = vmax.f32 %v1127, 0.0
      %v1144 = vmax.f32 %v1128, 0.0
      %v1145 = vmax.f32 %v1129, 0.0
      %v1146 = vmax.f32 %v1130, 0.0
      %v1147 = vmax.f32 %v1131, 0.0
      %v1148 = vmax.f32 %v1132, 0.0
      %v1149 = vmax.f32 %v1133, 0.0
      %v1150 = vmax.f32 %v1134, 0.0
      %v1151 = vmax.f32 %v1135, 0.0
      %v1152 = vmax.f32 %v1136, 0.0
      %v1153 = vmax.f32 %v1137, 0.0
      %v1154 = vmax.f32 %v1138, 0.0
      %v1155 = vmax.f32 %v1139, 0.0
      %v1156 = vmax.f32 %v1140, 0.0
      %v1157 = vpack.c.bf16 %v1142, %v1141
      %v1158 = vpack.c.bf16 %v1144, %v1143
      %v1159 = vpack.c.bf16 %v1146, %v1145
      %v1160 = vpack.c.bf16 %v1148, %v1147
      %v1161 = vpack.c.bf16 %v1150, %v1149
      %v1162 = vpack.c.bf16 %v1152, %v1151
      %v1163 = vpack.c.bf16 %v1154, %v1153
      %v1164 = vpack.c.bf16 %v1156, %v1155
      %v1165 = vld [vmem:[%s5] sm:$0xf]
      %v1166 = vld [vmem:[%s5 + $0x4] sm:$0xf]
      %v1167 = vld [vmem:[%s5 + $0x8] sm:$0xf]
      %v1168 = vld [vmem:[%s5 + $0xc] sm:$0xf]
      %v1169 = vld [vmem:[%s5 + $0x10] sm:$0xf]
      %v1170 = vld [vmem:[%s5 + $0x14] sm:$0xf]
      %v1171 = vld [vmem:[%s5 + $0x18] sm:$0xf]
      %v1172 = vld [vmem:[%s5 + $0x1c] sm:$0xf]
      %v1173 = vld [vmem:[%s5 + $0x20] sm:$0xf]
      %v1174 = vld [vmem:[%s5 + $0x24] sm:$0xf]
      %v1175 = vld [vmem:[%s5 + $0x28] sm:$0xf]
      %v1176 = vld [vmem:[%s5 + $0x2c] sm:$0xf]
      %v1177 = vld [vmem:[%s5 + $0x30] sm:$0xf]
      %v1178 = vld [vmem:[%s5 + $0x34] sm:$0xf]
      %v1179 = vld [vmem:[%s5 + $0x38] sm:$0xf]
      %v1180 = vld [vmem:[%s5 + $0x3c] sm:$0xf]
      %v1181 = vld [vmem:[%s6] sm:$0x1]
      %v1183 = vlaneseq
      %v1184 = vshrl.u32 %v1183, 7
      %v1185 = vsub.s32 0, %v1184
      %v1186 = vrot.slane %v1181, %v1185
      %v1204 = vunpack.c.l.b16 %v1165
      %v1205 = vunpack.c.l.b16 %v1166
      %v1206 = vunpack.c.l.b16 %v1167
      %v1207 = vunpack.c.l.b16 %v1168
      %v1208 = vunpack.c.l.b16 %v1169
      %v1209 = vunpack.c.l.b16 %v1170
      %v1210 = vunpack.c.l.b16 %v1171
      %v1211 = vunpack.c.l.b16 %v1172
      %v1212 = vunpack.c.l.b16 %v1173
      %v1213 = vunpack.c.l.b16 %v1174
      %v1214 = vunpack.c.l.b16 %v1175
      %v1215 = vunpack.c.l.b16 %v1176
      %v1216 = vunpack.c.l.b16 %v1177
      %v1217 = vunpack.c.l.b16 %v1178
      %v1218 = vunpack.c.l.b16 %v1179
      %v1219 = vunpack.c.l.b16 %v1180
      %v1220 = vpack.c.b16 %v1205, %v1204
      %v1221 = vpack.c.b16 %v1207, %v1206
      %v1222 = vpack.c.b16 %v1209, %v1208
      %v1223 = vpack.c.b16 %v1211, %v1210
      %v1224 = vpack.c.b16 %v1213, %v1212
      %v1225 = vpack.c.b16 %v1215, %v1214
      %v1226 = vpack.c.b16 %v1217, %v1216
      %v1227 = vpack.c.b16 %v1219, %v1218
      %1236 = vmatprep.subr.bf16.mxu0 0
      %1237 = vmatpush1.bf16.msra.mxu0 %v1227
      %1238 = vmatprep.subr.bf16.mxu0 0
      %1239 = vmatpush1.bf16.msra.mxu0 %v1226
      %1240 = vmatprep.subr.bf16.mxu0 0
      %1241 = vmatpush1.bf16.msra.mxu0 %v1225
      %1242 = vmatprep.subr.bf16.mxu0 0
      %1243 = vmatpush1.bf16.msra.mxu0 %v1224
      %1244 = vmatprep.subr.bf16.mxu0 0
      %1245 = vmatpush1.bf16.msra.mxu0 %v1223
      %1246 = vmatprep.subr.bf16.mxu0 0
      %1247 = vmatpush1.bf16.msra.mxu0 %v1222
      %1248 = vmatprep.subr.bf16.mxu0 0
      %1249 = vmatpush1.bf16.msra.mxu0 %v1221
      %1250 = vmatprep.subr.bf16.mxu0 0
      %1251 = vmatpush1.bf16.msra.mxu0 %v1220
      %1252 = vmatprep.subr.bf16.mxu0 0
      %1253 = vmatpush2.bf16.msra.mxu0 0
      %1254 = vmatprep.subr.bf16.mxu0 0
      %1255 = vmatpush2.bf16.msra.mxu0 0
      %1256 = vmatprep.subr.bf16.mxu0 0
      %1257 = vmatpush2.bf16.msra.mxu0 0
      %1258 = vmatprep.subr.bf16.mxu0 0
      %1259 = vmatpush2.bf16.msra.mxu0 0
      %1260 = vmatprep.subr.bf16.mxu0 0
      %1261 = vmatpush2.bf16.msra.mxu0 0
      %1262 = vmatprep.subr.bf16.mxu0 0
      %1263 = vmatpush2.bf16.msra.mxu0 0
      %1264 = vmatprep.subr.bf16.mxu0 0
      %1265 = vmatpush2.bf16.msra.mxu0 0
      %1266 = vmatprep.subr.bf16.mxu0 0
      %1267 = vmatpush2.bf16.msra.mxu0 0
      %1268 = vmatprep.mubr.bf16.mxu0 0
      %1269 = vmatmul.mubr.bf16.gmra.mxu0 %v1157
      %v1270 = vpop.f32.mrf.mxu0
      %v1271 = vadd.f32 %v1186, %v1270
      %v1272 = vpop.f32.mrf.mxu0
      %v1273 = vpop.f32.mrf.mxu0
      %v1274 = vadd.f32 %v1186, %v1273
      %v1275 = vpop.f32.mrf.mxu0
      %1276 = vmatprep.mubr.bf16.mxu0 0
      %1277 = vmatmul.mubr.bf16.gmra.mxu0 %v1158
      %v1278 = vpop.f32.mrf.mxu0
      %v1279 = vadd.f32 %v1186, %v1278
      %v1280 = vpop.f32.mrf.mxu0
      %v1281 = vpop.f32.mrf.mxu0
      %v1282 = vadd.f32 %v1186, %v1281
      %v1283 = vpop.f32.mrf.mxu0
      %1284 = vmatprep.mubr.bf16.mxu0 0
      %1285 = vmatmul.mubr.bf16.gmra.mxu0 %v1159
      %v1286 = vpop.f32.mrf.mxu0
      %v1287 = vadd.f32 %v1186, %v1286
      %v1288 = vpop.f32.mrf.mxu0
      %v1289 = vpop.f32.mrf.mxu0
      %v1290 = vadd.f32 %v1186, %v1289
      %v1291 = vpop.f32.mrf.mxu0
      %1292 = vmatprep.mubr.bf16.mxu0 0
      %1293 = vmatmul.mubr.bf16.gmra.mxu0 %v1160
      %v1294 = vpop.f32.mrf.mxu0
      %v1295 = vadd.f32 %v1186, %v1294
      %v1296 = vpop.f32.mrf.mxu0
      %v1297 = vpop.f32.mrf.mxu0
      %v1298 = vadd.f32 %v1186, %v1297
      %v1299 = vpop.f32.mrf.mxu0
      %1300 = vmatprep.mubr.bf16.mxu0 0
      %1301 = vmatmul.mubr.bf16.gmra.mxu0 %v1161
      %v1302 = vpop.f32.mrf.mxu0
      %v1303 = vadd.f32 %v1186, %v1302
      %v1304 = vpop.f32.mrf.mxu0
      %v1305 = vpop.f32.mrf.mxu0
      %v1306 = vadd.f32 %v1186, %v1305
      %v1307 = vpop.f32.mrf.mxu0
      %1308 = vmatprep.mubr.bf16.mxu0 0
      %1309 = vmatmul.mubr.bf16.gmra.mxu0 %v1162
      %v1310 = vpop.f32.mrf.mxu0
      %v1311 = vadd.f32 %v1186, %v1310
      %v1312 = vpop.f32.mrf.mxu0
      %v1313 = vpop.f32.mrf.mxu0
      %v1314 = vadd.f32 %v1186, %v1313
      %v1315 = vpop.f32.mrf.mxu0
      %1316 = vmatprep.mubr.bf16.mxu0 0
      %1317 = vmatmul.mubr.bf16.gmra.mxu0 %v1163
      %v1318 = vpop.f32.mrf.mxu0
      %v1319 = vadd.f32 %v1186, %v1318
      %v1320 = vpop.f32.mrf.mxu0
      %v1321 = vpop.f32.mrf.mxu0
      %v1322 = vadd.f32 %v1186, %v1321
      %v1323 = vpop.f32.mrf.mxu0
      %1324 = vmatprep.mubr.bf16.mxu0 0
      %1325 = vmatmul.mubr.bf16.gmra.mxu0 %v1164
      %v1326 = vpop.f32.mrf.mxu0
      %v1327 = vadd.f32 %v1186, %v1326
      %v1328 = vpop.f32.mrf.mxu0
      %v1329 = vpop.f32.mrf.mxu0
      %v1330 = vadd.f32 %v1186, %v1329
      %v1331 = vpop.f32.mrf.mxu0
      %1332 = vdwg.mxu0
      %v1333 = vadd.f32 %v1271, %v666
      %v1334 = vadd.f32 %v1274, %v672
      %v1335 = vadd.f32 %v1279, %v678
      %v1336 = vadd.f32 %v1282, %v684
      %v1337 = vadd.f32 %v1287, %v690
      %v1338 = vadd.f32 %v1290, %v696
      %v1339 = vadd.f32 %v1295, %v702
      %v1340 = vadd.f32 %v1298, %v708
      %v1341 = vadd.f32 %v1303, %v714
      %v1342 = vadd.f32 %v1306, %v720
      %v1343 = vadd.f32 %v1311, %v726
      %v1344 = vadd.f32 %v1314, %v732
      %v1345 = vadd.f32 %v1319, %v738
      %v1346 = vadd.f32 %v1322, %v744
      %v1347 = vadd.f32 %v1327, %v750
      %v1348 = vadd.f32 %v1330, %v756
      %v1349 = vmax.f32 %v1333, 0.0
      %v1350 = vmax.f32 %v1334, 0.0
      %v1351 = vmax.f32 %v1335, 0.0
      %v1352 = vmax.f32 %v1336, 0.0
      %v1353 = vmax.f32 %v1337, 0.0
      %v1354 = vmax.f32 %v1338, 0.0
      %v1355 = vmax.f32 %v1339, 0.0
      %v1356 = vmax.f32 %v1340, 0.0
      %v1357 = vmax.f32 %v1341, 0.0
      %v1358 = vmax.f32 %v1342, 0.0
      %v1359 = vmax.f32 %v1343, 0.0
      %v1360 = vmax.f32 %v1344, 0.0
      %v1361 = vmax.f32 %v1345, 0.0
      %v1362 = vmax.f32 %v1346, 0.0
      %v1363 = vmax.f32 %v1347, 0.0
      %v1364 = vmax.f32 %v1348, 0.0
      %v1365 = vpack.c.bf16 %v1350, %v1349
      %v1366 = vpack.c.bf16 %v1352, %v1351
      %v1367 = vpack.c.bf16 %v1354, %v1353
      %v1368 = vpack.c.bf16 %v1356, %v1355
      %v1369 = vpack.c.bf16 %v1358, %v1357
      %v1370 = vpack.c.bf16 %v1360, %v1359
      %v1371 = vpack.c.bf16 %v1362, %v1361
      %v1372 = vpack.c.bf16 %v1364, %v1363
      %v1373 = vld [vmem:[%s7] sm:$0xf]
      %v1374 = vld [vmem:[%s7 + $0x4] sm:$0xf]
      %v1375 = vld [vmem:[%s7 + $0x8] sm:$0xf]
      %v1376 = vld [vmem:[%s7 + $0xc] sm:$0xf]
      %v1377 = vld [vmem:[%s7 + $0x10] sm:$0xf]
      %v1378 = vld [vmem:[%s7 + $0x14] sm:$0xf]
      %v1379 = vld [vmem:[%s7 + $0x18] sm:$0xf]
      %v1380 = vld [vmem:[%s7 + $0x1c] sm:$0xf]
      %v1381 = vld [vmem:[%s7 + $0x20] sm:$0xf]
      %v1382 = vld [vmem:[%s7 + $0x24] sm:$0xf]
      %v1383 = vld [vmem:[%s7 + $0x28] sm:$0xf]
      %v1384 = vld [vmem:[%s7 + $0x2c] sm:$0xf]
      %v1385 = vld [vmem:[%s7 + $0x30] sm:$0xf]
      %v1386 = vld [vmem:[%s7 + $0x34] sm:$0xf]
      %v1387 = vld [vmem:[%s7 + $0x38] sm:$0xf]
      %v1388 = vld [vmem:[%s7 + $0x3c] sm:$0xf]
      %v1389 = vld [vmem:[%s8] sm:$0x1]
      %v1391 = vlaneseq
      %v1392 = vshrl.u32 %v1391, 7
      %v1393 = vsub.s32 0, %v1392
      %v1394 = vrot.slane %v1389, %v1393
      %v1412 = vunpack.c.l.b16 %v1373
      %v1413 = vunpack.c.l.b16 %v1374
      %v1414 = vunpack.c.l.b16 %v1375
      %v1415 = vunpack.c.l.b16 %v1376
      %v1416 = vunpack.c.l.b16 %v1377
      %v1417 = vunpack.c.l.b16 %v1378
      %v1418 = vunpack.c.l.b16 %v1379
      %v1419 = vunpack.c.l.b16 %v1380
      %v1420 = vunpack.c.l.b16 %v1381
      %v1421 = vunpack.c.l.b16 %v1382
      %v1422 = vunpack.c.l.b16 %v1383
      %v1423 = vunpack.c.l.b16 %v1384
      %v1424 = vunpack.c.l.b16 %v1385
      %v1425 = vunpack.c.l.b16 %v1386
      %v1426 = vunpack.c.l.b16 %v1387
      %v1427 = vunpack.c.l.b16 %v1388
      %v1428 = vpack.c.b16 %v1413, %v1412
      %v1429 = vpack.c.b16 %v1415, %v1414
      %v1430 = vpack.c.b16 %v1417, %v1416
      %v1431 = vpack.c.b16 %v1419, %v1418
      %v1432 = vpack.c.b16 %v1421, %v1420
      %v1433 = vpack.c.b16 %v1423, %v1422
      %v1434 = vpack.c.b16 %v1425, %v1424
      %v1435 = vpack.c.b16 %v1427, %v1426
      %1444 = vmatprep.subr.bf16.mxu0 0
      %1445 = vmatpush1.bf16.msra.mxu0 %v1435
      %1446 = vmatprep.subr.bf16.mxu0 0
      %1447 = vmatpush1.bf16.msra.mxu0 %v1434
      %1448 = vmatprep.subr.bf16.mxu0 0
      %1449 = vmatpush1.bf16.msra.mxu0 %v1433
      %1450 = vmatprep.subr.bf16.mxu0 0
      %1451 = vmatpush1.bf16.msra.mxu0 %v1432
      %1452 = vmatprep.subr.bf16.mxu0 0
      %1453 = vmatpush1.bf16.msra.mxu0 %v1431
      %1454 = vmatprep.subr.bf16.mxu0 0
      %1455 = vmatpush1.bf16.msra.mxu0 %v1430
      %1456 = vmatprep.subr.bf16.mxu0 0
      %1457 = vmatpush1.bf16.msra.mxu0 %v1429
      %1458 = vmatprep.subr.bf16.mxu0 0
      %1459 = vmatpush1.bf16.msra.mxu0 %v1428
      %1460 = vmatprep.subr.bf16.mxu0 0
      %1461 = vmatpush2.bf16.msra.mxu0 0
      %1462 = vmatprep.subr.bf16.mxu0 0
      %1463 = vmatpush2.bf16.msra.mxu0 0
      %1464 = vmatprep.subr.bf16.mxu0 0
      %1465 = vmatpush2.bf16.msra.mxu0 0
      %1466 = vmatprep.subr.bf16.mxu0 0
      %1467 = vmatpush2.bf16.msra.mxu0 0
      %1468 = vmatprep.subr.bf16.mxu0 0
      %1469 = vmatpush2.bf16.msra.mxu0 0
      %1470 = vmatprep.subr.bf16.mxu0 0
      %1471 = vmatpush2.bf16.msra.mxu0 0
      %1472 = vmatprep.subr.bf16.mxu0 0
      %1473 = vmatpush2.bf16.msra.mxu0 0
      %1474 = vmatprep.subr.bf16.mxu0 0
      %1475 = vmatpush2.bf16.msra.mxu0 0
      %1476 = vmatprep.mubr.bf16.mxu0 0
      %1477 = vmatmul.mubr.bf16.gmra.mxu0 %v1365
      %v1478 = vpop.f32.mrf.mxu0
      %v1479 = vadd.f32 %v1394, %v1478
      %v1480 = vpop.f32.mrf.mxu0
      %v1481 = vpop.f32.mrf.mxu0
      %v1482 = vadd.f32 %v1394, %v1481
      %v1483 = vpop.f32.mrf.mxu0
      %1484 = vmatprep.mubr.bf16.mxu0 0
      %1485 = vmatmul.mubr.bf16.gmra.mxu0 %v1366
      %v1486 = vpop.f32.mrf.mxu0
      %v1487 = vadd.f32 %v1394, %v1486
      %v1488 = vpop.f32.mrf.mxu0
      %v1489 = vpop.f32.mrf.mxu0
      %v1490 = vadd.f32 %v1394, %v1489
      %v1491 = vpop.f32.mrf.mxu0
      %1492 = vmatprep.mubr.bf16.mxu0 0
      %1493 = vmatmul.mubr.bf16.gmra.mxu0 %v1367
      %v1494 = vpop.f32.mrf.mxu0
      %v1495 = vadd.f32 %v1394, %v1494
      %v1496 = vpop.f32.mrf.mxu0
      %v1497 = vpop.f32.mrf.mxu0
      %v1498 = vadd.f32 %v1394, %v1497
      %v1499 = vpop.f32.mrf.mxu0
      %1500 = vmatprep.mubr.bf16.mxu0 0
      %1501 = vmatmul.mubr.bf16.gmra.mxu0 %v1368
      %v1502 = vpop.f32.mrf.mxu0
      %v1503 = vadd.f32 %v1394, %v1502
      %v1504 = vpop.f32.mrf.mxu0
      %v1505 = vpop.f32.mrf.mxu0
      %v1506 = vadd.f32 %v1394, %v1505
      %v1507 = vpop.f32.mrf.mxu0
      %1508 = vmatprep.mubr.bf16.mxu0 0
      %1509 = vmatmul.mubr.bf16.gmra.mxu0 %v1369
      %v1510 = vpop.f32.mrf.mxu0
      %v1511 = vadd.f32 %v1394, %v1510
      %v1512 = vpop.f32.mrf.mxu0
      %v1513 = vpop.f32.mrf.mxu0
      %v1514 = vadd.f32 %v1394, %v1513
      %v1515 = vpop.f32.mrf.mxu0
      %1516 = vmatprep.mubr.bf16.mxu0 0
      %1517 = vmatmul.mubr.bf16.gmra.mxu0 %v1370
      %v1518 = vpop.f32.mrf.mxu0
      %v1519 = vadd.f32 %v1394, %v1518
      %v1520 = vpop.f32.mrf.mxu0
      %v1521 = vpop.f32.mrf.mxu0
      %v1522 = vadd.f32 %v1394, %v1521
      %v1523 = vpop.f32.mrf.mxu0
      %1524 = vmatprep.mubr.bf16.mxu0 0
      %1525 = vmatmul.mubr.bf16.gmra.mxu0 %v1371
      %v1526 = vpop.f32.mrf.mxu0
      %v1527 = vadd.f32 %v1394, %v1526
      %v1528 = vpop.f32.mrf.mxu0
      %v1529 = vpop.f32.mrf.mxu0
      %v1530 = vadd.f32 %v1394, %v1529
      %v1531 = vpop.f32.mrf.mxu0
      %1532 = vmatprep.mubr.bf16.mxu0 0
      %1533 = vmatmul.mubr.bf16.gmra.mxu0 %v1372
      %v1534 = vpop.f32.mrf.mxu0
      %v1535 = vadd.f32 %v1394, %v1534
      %v1536 = vpop.f32.mrf.mxu0
      %v1537 = vpop.f32.mrf.mxu0
      %v1538 = vadd.f32 %v1394, %v1537
      %v1539 = vpop.f32.mrf.mxu0
      %1540 = vdwg.mxu0
      %v1541 = vadd.f32 %v1479, %v825
      %v1542 = vadd.f32 %v1482, %v830
      %v1543 = vadd.f32 %v1487, %v835
      %v1544 = vadd.f32 %v1490, %v840
      %v1545 = vadd.f32 %v1495, %v845
      %v1546 = vadd.f32 %v1498, %v850
      %v1547 = vadd.f32 %v1503, %v855
      %v1548 = vadd.f32 %v1506, %v860
      %v1549 = vadd.f32 %v1511, %v865
      %v1550 = vadd.f32 %v1514, %v870
      %v1551 = vadd.f32 %v1519, %v875
      %v1552 = vadd.f32 %v1522, %v880
      %v1553 = vadd.f32 %v1527, %v885
      %v1554 = vadd.f32 %v1530, %v890
      %v1555 = vadd.f32 %v1535, %v895
      %v1556 = vadd.f32 %v1538, %v900
      %v1557 = vmax.f32 %v1541, 0.0
      %v1558 = vmax.f32 %v1542, 0.0
      %v1559 = vmax.f32 %v1543, 0.0
      %v1560 = vmax.f32 %v1544, 0.0
      %v1561 = vmax.f32 %v1545, 0.0
      %v1562 = vmax.f32 %v1546, 0.0
      %v1563 = vmax.f32 %v1547, 0.0
      %v1564 = vmax.f32 %v1548, 0.0
      %v1565 = vmax.f32 %v1549, 0.0
      %v1566 = vmax.f32 %v1550, 0.0
      %v1567 = vmax.f32 %v1551, 0.0
      %v1568 = vmax.f32 %v1552, 0.0
      %v1569 = vmax.f32 %v1553, 0.0
      %v1570 = vmax.f32 %v1554, 0.0
      %v1571 = vmax.f32 %v1555, 0.0
      %v1572 = vmax.f32 %v1556, 0.0
      %v1573 = vld [vmem:[%s9] sm:$0xff]
      %v1574 = vld [vmem:[%s9 + $0x8] sm:$0xff]
      %v1575 = vld [vmem:[%s9 + $0x10] sm:$0xff]
      %v1576 = vld [vmem:[%s9 + $0x18] sm:$0xff]
      %v1577 = vld [vmem:[%s9 + $0x20] sm:$0xff]
      %v1578 = vld [vmem:[%s9 + $0x28] sm:$0xff]
      %v1579 = vld [vmem:[%s9 + $0x30] sm:$0xff]
      %v1580 = vld [vmem:[%s9 + $0x38] sm:$0xff]
      %v1581 = vld [vmem:[%s9 + $0x40] sm:$0xff]
      %v1582 = vld [vmem:[%s9 + $0x48] sm:$0xff]
      %v1583 = vld [vmem:[%s9 + $0x50] sm:$0xff]
      %v1584 = vld [vmem:[%s9 + $0x58] sm:$0xff]
      %v1585 = vld [vmem:[%s9 + $0x60] sm:$0xff]
      %v1586 = vld [vmem:[%s9 + $0x68] sm:$0xff]
      %v1587 = vld [vmem:[%s9 + $0x70] sm:$0xff]
      %v1588 = vld [vmem:[%s9 + $0x78] sm:$0xff]
      %v1589 = vld [vmem:[%s10] sm:$0x1]
      %v1591 = vlaneseq
      %v1592 = vshrl.u32 %v1591, 7
      %v1593 = vsub.s32 0, %v1592
      %v1594 = vrot.slane %v1589, %v1593
      %1596 = vmatprep.subr.mxu0 0.0
      %1597 = vmatpush1.msra.mxu0 %v1588
      %1598 = vmatprep.subr.mxu0 0.0
      %1599 = vmatpush1.msra.mxu0 %v1587
      %1600 = vmatprep.subr.mxu0 0.0
      %1601 = vmatpush1.msra.mxu0 %v1586
      %1602 = vmatprep.subr.mxu0 0.0
      %1603 = vmatpush1.msra.mxu0 %v1585
      %1604 = vmatprep.subr.mxu0 0.0
      %1605 = vmatpush1.msra.mxu0 %v1584
      %1606 = vmatprep.subr.mxu0 0.0
      %1607 = vmatpush1.msra.mxu0 %v1583
      %1608 = vmatprep.subr.mxu0 0.0
      %1609 = vmatpush1.msra.mxu0 %v1582
      %1610 = vmatprep.subr.mxu0 0.0
      %1611 = vmatpush1.msra.mxu0 %v1581
      %1612 = vmatprep.subr.mxu0 0.0
      %1613 = vmatpush1.msra.mxu0 %v1580
      %1614 = vmatprep.subr.mxu0 0.0
      %1615 = vmatpush1.msra.mxu0 %v1579
      %1616 = vmatprep.subr.mxu0 0.0
      %1617 = vmatpush1.msra.mxu0 %v1578
      %1618 = vmatprep.subr.mxu0 0.0
      %1619 = vmatpush1.msra.mxu0 %v1577
      %1620 = vmatprep.subr.mxu0 0.0
      %1621 = vmatpush1.msra.mxu0 %v1576
      %1622 = vmatprep.subr.mxu0 0.0
      %1623 = vmatpush1.msra.mxu0 %v1575
      %1624 = vmatprep.subr.mxu0 0.0
      %1625 = vmatpush1.msra.mxu0 %v1574
      %1626 = vmatprep.subr.mxu0 0.0
      %1627 = vmatpush1.msra.mxu0 %v1573
      %1628 = vmatprep.subr.mxu0 0.0
      %1629 = vmatpush2.msra.mxu0 0.0
      %1630 = vmatprep.subr.mxu0 0.0
      %1631 = vmatpush2.msra.mxu0 0.0
      %1632 = vmatprep.subr.mxu0 0.0
      %1633 = vmatpush2.msra.mxu0 0.0
      %1634 = vmatprep.subr.mxu0 0.0
      %1635 = vmatpush2.msra.mxu0 0.0
      %1636 = vmatprep.subr.mxu0 0.0
      %1637 = vmatpush2.msra.mxu0 0.0
      %1638 = vmatprep.subr.mxu0 0.0
      %1639 = vmatpush2.msra.mxu0 0.0
      %1640 = vmatprep.subr.mxu0 0.0
      %1641 = vmatpush2.msra.mxu0 0.0
      %1642 = vmatprep.subr.mxu0 0.0
      %1643 = vmatpush2.msra.mxu0 0.0
      %1644 = vmatprep.subr.mxu0 0.0
      %1645 = vmatpush2.msra.mxu0 0.0
      %1646 = vmatprep.subr.mxu0 0.0
      %1647 = vmatpush2.msra.mxu0 0.0
      %1648 = vmatprep.subr.mxu0 0.0
      %1649 = vmatpush2.msra.mxu0 0.0
      %1650 = vmatprep.subr.mxu0 0.0
      %1651 = vmatpush2.msra.mxu0 0.0
      %1652 = vmatprep.subr.mxu0 0.0
      %1653 = vmatpush2.msra.mxu0 0.0
      %1654 = vmatprep.subr.mxu0 0.0
      %1655 = vmatpush2.msra.mxu0 0.0
      %1656 = vmatprep.subr.mxu0 0.0
      %1657 = vmatpush2.msra.mxu0 0.0
      %1658 = vmatprep.subr.mxu0 0.0
      %1659 = vmatpush2.msra.mxu0 0.0
      %1660 = vmatprep.mubr.f32.mxu0 0.0
      %1661 = vmatmul.mubr.f32.gmra.mxu0 %v1557
      %v1662 = vpop.f32.mrf.mxu0
      %v1663 = vadd.f32 %v1594, %v1662
      %v1664 = vpop.f32.mrf.mxu0
      %1665 = vmatprep.mubr.f32.mxu0 0.0
      %1666 = vmatmul.mubr.f32.gmra.mxu0 %v1558
      %v1667 = vpop.f32.mrf.mxu0
      %v1668 = vadd.f32 %v1594, %v1667
      %v1669 = vpop.f32.mrf.mxu0
      %1670 = vmatprep.mubr.f32.mxu0 0.0
      %1671 = vmatmul.mubr.f32.gmra.mxu0 %v1559
      %v1672 = vpop.f32.mrf.mxu0
      %v1673 = vadd.f32 %v1594, %v1672
      %v1674 = vpop.f32.mrf.mxu0
      %1675 = vmatprep.mubr.f32.mxu0 0.0
      %1676 = vmatmul.mubr.f32.gmra.mxu0 %v1560
      %v1677 = vpop.f32.mrf.mxu0
      %v1678 = vadd.f32 %v1594, %v1677
      %v1679 = vpop.f32.mrf.mxu0
      %1680 = vmatprep.mubr.f32.mxu0 0.0
      %1681 = vmatmul.mubr.f32.gmra.mxu0 %v1561
      %v1682 = vpop.f32.mrf.mxu0
      %v1683 = vadd.f32 %v1594, %v1682
      %v1684 = vpop.f32.mrf.mxu0
      %1685 = vmatprep.mubr.f32.mxu0 0.0
      %1686 = vmatmul.mubr.f32.gmra.mxu0 %v1562
      %v1687 = vpop.f32.mrf.mxu0
      %v1688 = vadd.f32 %v1594, %v1687
      %v1689 = vpop.f32.mrf.mxu0
      %1690 = vmatprep.mubr.f32.mxu0 0.0
      %1691 = vmatmul.mubr.f32.gmra.mxu0 %v1563
      %v1692 = vpop.f32.mrf.mxu0
      %v1693 = vadd.f32 %v1594, %v1692
      %v1694 = vpop.f32.mrf.mxu0
      %1695 = vmatprep.mubr.f32.mxu0 0.0
      %1696 = vmatmul.mubr.f32.gmra.mxu0 %v1564
      %v1697 = vpop.f32.mrf.mxu0
      %v1698 = vadd.f32 %v1594, %v1697
      %v1699 = vpop.f32.mrf.mxu0
      %1700 = vmatprep.mubr.f32.mxu0 0.0
      %1701 = vmatmul.mubr.f32.gmra.mxu0 %v1565
      %v1702 = vpop.f32.mrf.mxu0
      %v1703 = vadd.f32 %v1594, %v1702
      %v1704 = vpop.f32.mrf.mxu0
      %1705 = vmatprep.mubr.f32.mxu0 0.0
      %1706 = vmatmul.mubr.f32.gmra.mxu0 %v1566
      %v1707 = vpop.f32.mrf.mxu0
      %v1708 = vadd.f32 %v1594, %v1707
      %v1709 = vpop.f32.mrf.mxu0
      %1710 = vmatprep.mubr.f32.mxu0 0.0
      %1711 = vmatmul.mubr.f32.gmra.mxu0 %v1567
      %v1712 = vpop.f32.mrf.mxu0
      %v1713 = vadd.f32 %v1594, %v1712
      %v1714 = vpop.f32.mrf.mxu0
      %1715 = vmatprep.mubr.f32.mxu0 0.0
      %1716 = vmatmul.mubr.f32.gmra.mxu0 %v1568
      %v1717 = vpop.f32.mrf.mxu0
      %v1718 = vadd.f32 %v1594, %v1717
      %v1719 = vpop.f32.mrf.mxu0
      %1720 = vmatprep.mubr.f32.mxu0 0.0
      %1721 = vmatmul.mubr.f32.gmra.mxu0 %v1569
      %v1722 = vpop.f32.mrf.mxu0
      %v1723 = vadd.f32 %v1594, %v1722
      %v1724 = vpop.f32.mrf.mxu0
      %1725 = vmatprep.mubr.f32.mxu0 0.0
      %1726 = vmatmul.mubr.f32.gmra.mxu0 %v1570
      %v1727 = vpop.f32.mrf.mxu0
      %v1728 = vadd.f32 %v1594, %v1727
      %v1729 = vpop.f32.mrf.mxu0
      %1730 = vmatprep.mubr.f32.mxu0 0.0
      %1731 = vmatmul.mubr.f32.gmra.mxu0 %v1571
      %v1732 = vpop.f32.mrf.mxu0
      %v1733 = vadd.f32 %v1594, %v1732
      %v1734 = vpop.f32.mrf.mxu0
      %1735 = vmatprep.mubr.f32.mxu0 0.0
      %1736 = vmatmul.mubr.f32.gmra.mxu0 %v1572
      %v1737 = vpop.f32.mrf.mxu0
      %v1738 = vadd.f32 %v1594, %v1737
      %v1739 = vpop.f32.mrf.mxu0
      %1740 = vdwg.mxu0
      %1741 = vst.msk [vmem:[%s410] sm:$0xff] %vm927, %v1663
      %1742 = vst.msk [vmem:[%s410 + $0x8] sm:$0xff] %vm927, %v1668
      %1743 = vst.msk [vmem:[%s410 + $0x10] sm:$0xff] %vm927, %v1673
      %1744 = vst.msk [vmem:[%s410 + $0x18] sm:$0xff] %vm927, %v1678
      %1745 = vst.msk [vmem:[%s410 + $0x20] sm:$0xff] %vm927, %v1683
      %1746 = vst.msk [vmem:[%s410 + $0x28] sm:$0xff] %vm927, %v1688
      %1747 = vst.msk [vmem:[%s410 + $0x30] sm:$0xff] %vm927, %v1693
      %1748 = vst.msk [vmem:[%s410 + $0x38] sm:$0xff] %vm927, %v1698
      %1749 = vst.msk [vmem:[%s410 + $0x40] sm:$0xff] %vm927, %v1703
      %1750 = vst.msk [vmem:[%s410 + $0x48] sm:$0xff] %vm927, %v1708
      %1751 = vst.msk [vmem:[%s410 + $0x50] sm:$0xff] %vm927, %v1713
      %1752 = vst.msk [vmem:[%s410 + $0x58] sm:$0xff] %vm927, %v1718
      %1753 = vst.msk [vmem:[%s410 + $0x60] sm:$0xff] %vm927, %v1723
      %1754 = vst.msk [vmem:[%s410 + $0x68] sm:$0xff] %vm927, %v1728
      %1755 = vst.msk [vmem:[%s410 + $0x70] sm:$0xff] %vm927, %v1733
      %1756 = vst.msk [vmem:[%s410 + $0x78] sm:$0xff] %vm927, %v1738
      %s1757 = smul.u32 16, %s22
      %p1758 = scmp.lt.s32.totalorder %s1757, 31
      %s1759 = scalar_select %p1758, %s1757, 31
      %s1760 = smul.addr %s1759, 8
      %s1761 = scalar_lea.vmem %s11, %s1760
      // Predicated region
      $region65: #{tpu_custom_call.1} parent=63 // pred_check
        %p1762 = pneg %p281
      $region66: #{tpu_custom_call.1} parent=63 // pred_check_branch
        %1764 = sbr.rel (%p1762) target = $region68
      $region67: #{tpu_custom_call.1} parent=63 // pred_region
        %s1765 = smul.u32 16, %s22
      $region68: #{tpu_custom_call.1} parent=63 // pred_fallthru
        _
    $region64: #{tpu_custom_call.1} parent=5 // pred_fallthru
      _
    %p1766 = scmp.le.s32.totalorder 2, %s17
    // Predicated region
    $region69: #{tpu_custom_call.1} parent=5 // pred_check
      %p1767 = pneg %p1766
    $region70: #{tpu_custom_call.1} parent=5 // pred_check_branch
      %1769 = sbr.rel (%p1767) target = $region72
    $region71: #{tpu_custom_call.1} parent=5 // pred_region
      %s1770 = ssub.s32 %s17, 2
      // Predicated region
      $region73: #{tpu_custom_call.1} parent=71 // pred_check
        %p1771 = pneg %p287
      $region74: #{tpu_custom_call.1} parent=71 // pred_check_branch
        %1773 = sbr.rel (%p1771) target = $region76
      $region75: #{tpu_custom_call.1} parent=71 // pred_region
        %s1774 = smul.u32 16, %s23
        %p1775 = scmp.lt.s32.totalorder %s1774, 31
        %s1776 = scalar_select %p1775, %s1774, 31
        %s1777 = smul.addr %s1776, 8
        %s1778 = scalar_lea.vmem %s11, %s1777
      $region76: #{tpu_custom_call.1} parent=71 // pred_fallthru
        _
    $region72: #{tpu_custom_call.1} parent=5 // pred_fallthru
      _
  $region6: #{tpu_custom_call.1} parent=0 // loop_footer
    %s21 = sadd.s32 1, %s17
  $region7: #{tpu_custom_call.1} parent=0 // loop_footer_branch
    %16 = sbr.rel target = $region3
  $region8: #{tpu_custom_call.1} parent=0 // loop_exit
    _

</llo_original>
